<compile_context>
chip_gen: v5e
topology: v5e:2x2
jax: 0.10.0
libtpu: 0.0.40
codegen_flags: <defaults>
</compile_context>

<pallas_src>
import functools

import jax
import jax.numpy as jnp
from jax.experimental import pallas as pl
from jax.experimental.pallas import tpu as pltpu


def base_lstm_kernel(
    # inputs (VMEM)
    x_ref,      # (1, W*Bt, D)   window inputs, row t*Bt + b (time-major in-block)
    h0_ref,     # (Bt, Hp)       initial hidden, zero-padded, f32
    c0_ref,     # (Bt, Hp)       initial cell,   zero-padded, f32
    win_ref,    # (D, 4*Hp)      folded fc6@fc7@fc8 @ [Wii|Wif|Wig|Wio]
    wh_ref,     # (Hk, 4*Hp)     [Whi|Whf|Whg|Who], rows trimmed to Hk
    wpost_ref,  # (Hk, Hp)       folded fc1..fc5@fc9@fc10, padded
    drop_ref,   # (Bt, Hp)       precomputed inverted-dropout scale, f32
    # outputs (VMEM)
    out_ref,    # (3, Bt, Hp)    row0 = logits, row1 = new_h, row2 = new_c
    *, window_size, batch_block, hidden_pad, hidden_k,
):
    W, Bt, Hp, Hk = window_size, batch_block, hidden_pad, hidden_k
    f32 = jnp.float32

    # x-path gate pre-activations for the whole window, off the serial path.
    x = x_ref[0]                                                     # (W*Bt, D)
    xg = jnp.dot(x, win_ref[...], preferred_element_type=f32)        # (W*Bt, 4Hp)

    wh = wh_ref[...]                                                 # (Hk, 4Hp)
    h = h0_ref[...]                                                  # (Bt, Hp) f32
    c = c0_ref[...]                                                  # (Bt, Hp) f32

    # Fully unrolled recurrence, torch gate order (i, f, g, o), bias-free.
    # wh is loop-invariant; Mosaic hoists the MXU weight push out of the
    # unrolled body.
    # TODO(synk): if a bundle dump shows wh being re-pushed per step, switch
    # to pltpu.matmul_push_rhs / matmul_acc_lhs / matmul_pop.
    hs = []
    for t in range(W):
        hg = jnp.dot(h[:, :Hk].astype(wh.dtype), wh,
                     preferred_element_type=f32)                     # (Bt, 4Hp)
        gates = xg[t * Bt:(t + 1) * Bt, :] + hg
        i_g = jax.nn.sigmoid(gates[:, 0 * Hp:1 * Hp])
        f_g = jax.nn.sigmoid(gates[:, 1 * Hp:2 * Hp])
        g_g = jnp.tanh(gates[:, 2 * Hp:3 * Hp])
        o_g = jax.nn.sigmoid(gates[:, 3 * Hp:4 * Hp])
        c = f_g * c + i_g * g_g
        h = o_g * jnp.tanh(c)
        hs.append(h)                    # each h_t is exactly one f32 vreg

    # ---- inverted dropout on the final hidden state (mask precomputed) ----
    h_drop = h * drop_ref[...]

    # ---- attention over the window's hidden states (softmax over W) ----
    # Done directly on the per-step values; no concatenate / scratch.
    scores = [jnp.sum(ht * h_drop, axis=-1, keepdims=True) for ht in hs]  # (Bt,1)
    m = scores[0]
    for s in scores[1:]:
        m = jnp.maximum(m, s)
    es = [jnp.exp(s - m) for s in scores]
    denom = es[0]
    for e in es[1:]:
        denom = denom + e
    inv = pl.reciprocal(denom, approx=True)
    new_h = (es[0] * inv) * hs[0]
    for e, ht in zip(es[1:], hs[1:]):
        new_h = new_h + (e * inv) * ht                               # (Bt, Hp)

    # ---- folded post-MLP + packed lane-dense store ----
    logits = jnp.dot(new_h[:, :Hk].astype(wpost_ref.dtype), wpost_ref[...],
                     preferred_element_type=f32)                     # (Bt, Hp)
    out_ref[0] = logits
    out_ref[1] = new_h
    out_ref[2] = c


def _round_up(n, m):
    return ((n + m - 1) // m) * m


def make_params(key, input_dim, hidden_dim, num_classes):
    """Deterministic parameter init; every weight already stored as (in, out)."""
    D, H, C = input_dim, hidden_dim, num_classes
    dims = {
        "w6": (D, 5 * D), "w7": (5 * D, 2 * D), "w8": (2 * D, D),
        "w1": (H, 2 * H), "w2": (2 * H, H), "w3": (H, H // 2),
        "w4": (H // 2, H // 5), "w5": (H // 5, H // 10),
        "w9": (H // 10, H // 20), "w10": (H // 20, C),
        # LSTM input->hidden and hidden->hidden per-gate weights (i, f, g, o)
        "wii": (D, H), "wif": (D, H), "wig": (D, H), "wio": (D, H),
        "whi": (H, H), "whf": (H, H), "whg": (H, H), "who": (H, H),
    }
    params = {}
    for name in sorted(dims):
        key, sub = jax.random.split(key)
        params[name] = jax.random.normal(sub, dims[name], jnp.float32) * 0.1
    return params


def base_lstm_forward_batched(x, h0, c0, dropout_prob, dropout_key, params, *,
                              window_size, hidden_dim, num_classes,
                              batch_block=8, weight_dtype=jnp.bfloat16):
    """x: (B, W, D); h0, c0: (B, H). Returns out (B,C), (new_h (B,H), new_c (B,H))."""
    B, W, D = x.shape
    H, C = hidden_dim, num_classes
    assert W == window_size
    Hp = _round_up(H, 128)
    Cp = _round_up(C, 128)
    Hk = _round_up(H, 16)            # trimmed contraction dim for h-path dots
    assert Cp <= Hp, "packed output assumes num_classes fits in Hp lanes"
    Bt = batch_block
    Bp = _round_up(B, Bt)
    nblk = Bp // Bt

    # ---- trace-time folding of the activation-free Linear chains ----
    w_pre = params["w6"] @ params["w7"] @ params["w8"]                     # (D, D)
    wi = jnp.concatenate([params["wii"], params["wif"],
                          params["wig"], params["wio"]], axis=1)           # (D, 4H)
    w_in = w_pre @ wi                                                      # (D, 4H)
    wh = jnp.concatenate([params["whi"], params["whf"],
                          params["whg"], params["who"]], axis=1)           # (H, 4H)
    w_post = (params["w1"] @ params["w2"] @ params["w3"] @ params["w4"]
              @ params["w5"] @ params["w9"] @ params["w10"])               # (H, C)

    # Pad each gate block's columns to Hp so gate slices are lane-aligned.
    def pad_gate_cols(w):
        return jnp.concatenate(
            [jnp.pad(w[:, g * H:(g + 1) * H], ((0, 0), (0, Hp - H)))
             for g in range(4)], axis=1)

    w_in_p = pad_gate_cols(w_in).astype(weight_dtype)                      # (D, 4Hp)
    wh_p = jnp.pad(pad_gate_cols(wh),
                   ((0, Hk - H), (0, 0))).astype(weight_dtype)             # (Hk, 4Hp)
    w_post_p = jnp.pad(w_post,
                       ((0, Hk - H), (0, Hp - C))).astype(weight_dtype)    # (Hk, Hp)

    # Group inputs per batch-block, time-major within the block:
    # x_g[i, t*Bt + b_local] = x[i*Bt + b_local, t]
    x_p = jnp.pad(x.astype(weight_dtype), ((0, Bp - B), (0, 0), (0, 0)))   # (Bp, W, D)
    x_g = (x_p.reshape(nblk, Bt, W, D)
              .transpose(0, 2, 1, 3)
              .reshape(nblk, W * Bt, D))

    h2 = jnp.pad(h0.astype(jnp.float32), ((0, Bp - B), (0, Hp - H)))       # (Bp, Hp)
    c2 = jnp.pad(c0.astype(jnp.float32), ((0, Bp - B), (0, Hp - H)))       # (Bp, Hp)

    # Inverted-dropout scale, computed outside the kernel with jax.random.
    # TODO(synk): dropout mask cannot bit-match torch's RNG stream; semantics
    # match (drop with prob p, scale kept units by 1/(1-p); p==1 -> zeros).
    p = jnp.float32(dropout_prob)
    keep = (jax.random.uniform(dropout_key, (Bp, Hp), jnp.float32) >= p)
    scale = jnp.where(p < 1.0, 1.0 / (1.0 - p), 0.0)
    drop = jnp.where(p > 0.0, keep.astype(jnp.float32) * scale,
                     jnp.ones((Bp, Hp), jnp.float32))

    kernel = functools.partial(base_lstm_kernel, window_size=W,
                               batch_block=Bt, hidden_pad=Hp, hidden_k=Hk)

    packed = pl.pallas_call(
        kernel,
        out_shape=jax.ShapeDtypeStruct((3, Bp, Hp), jnp.float32),
        grid=(nblk,),
        in_specs=[
            pl.BlockSpec((1, W * Bt, D), lambda i: (i, 0, 0)),   # x (per block)
            pl.BlockSpec((Bt, Hp), lambda i: (i, 0)),            # h0
            pl.BlockSpec((Bt, Hp), lambda i: (i, 0)),            # c0
            pl.BlockSpec((D, 4 * Hp), lambda i: (0, 0)),         # w_in (resident)
            pl.BlockSpec((Hk, 4 * Hp), lambda i: (0, 0)),        # wh   (resident)
            pl.BlockSpec((Hk, Hp), lambda i: (0, 0)),            # wpost (resident)
            pl.BlockSpec((Bt, Hp), lambda i: (i, 0)),            # dropout scale
        ],
        out_specs=pl.BlockSpec((3, Bt, Hp), lambda i: (0, i, 0)),
        compiler_params=pltpu.CompilerParams(
            dimension_semantics=("parallel",)),
    )(x_g, h2, c2, w_in_p, wh_p, w_post_p, drop)

    out = packed[0, :B, :C]
    new_h = packed[1, :B, :H]
    new_c = packed[2, :B, :H]
    return out, (new_h, new_c)


def base_lstm_forward(input_, hidden_state, cell_state, dropout_prob, dropout_key,
                      params, *, window_size, hidden_dim, num_classes, **kw):
    """Single-sample interface matching the torch module shapes:
    input_ (W,1,D), hidden_state (1,1,H), cell_state (1,1,H)."""
    W, H = window_size, hidden_dim
    D = input_.shape[-1]
    xb = input_.reshape(W, D)[None]               # (1, W, D)
    hb = hidden_state.reshape(1, H)
    cb = cell_state.reshape(1, H)
    out, (nh, nc) = base_lstm_forward_batched(
        xb, hb, cb, dropout_prob, dropout_key, params,
        window_size=W, hidden_dim=H, num_classes=num_classes, **kw)
    # Match torch return: (out (1,C), (next_hidden (1,1,H), next_cell (1,1,H)))
    return out, (nh.reshape(1, 1, H), nc.reshape(1, 1, H))


def ref_forward(x, h0, c0, params, W, H):
    """Pure-JAX f32 reference (unfused weights, dropout_prob == 0 path)."""
    x2 = x.reshape(W, -1)
    y = x2 @ params["w6"]
    y = y @ params["w7"]
    xp = y @ params["w8"]
    h = h0.reshape(1, H)
    c = c0.reshape(1, H)
    hs = []
    for t in range(W):
        xt = xp[t:t + 1]
        i = jax.nn.sigmoid(xt @ params["wii"] + h @ params["whi"])
        f = jax.nn.sigmoid(xt @ params["wif"] + h @ params["whf"])
        g = jnp.tanh(xt @ params["wig"] + h @ params["whg"])
        o = jax.nn.sigmoid(xt @ params["wio"] + h @ params["who"])
        c = f * c + i * g
        h = o * jnp.tanh(c)
        hs.append(h)
    all_h = jnp.concatenate(hs, axis=0)                       # (W, H)
    scores = jnp.sum(all_h * h, axis=1, keepdims=True)        # (W, 1)
    attn = jax.nn.softmax(scores, axis=0)
    new_h = jnp.sum(attn * all_h, axis=0, keepdims=True)      # (1, H)
    y = new_h
    for n in ["w1", "w2", "w3", "w4", "w5", "w9", "w10"]:
        y = y @ params[n]
    return y, new_h, c


if __name__ == "__main__":
    input_dim, hidden_dim, num_classes, window = 10, 40, 3, 8
    B = 16

    key = jax.random.PRNGKey(0)
    key, kx, kh, kc, kdrop = jax.random.split(key, 5)
    params = make_params(key, input_dim, hidden_dim, num_classes)

    x = jax.random.normal(kx, (B, window, input_dim), jnp.float32)
    h0 = jax.random.normal(kh, (B, hidden_dim), jnp.float32) * 0.1
    c0 = jax.random.normal(kc, (B, hidden_dim), jnp.float32) * 0.1

    out, (nh, nc) = base_lstm_forward_batched(
        x, h0, c0, dropout_prob=0.0, dropout_key=kdrop, params=params,
        window_size=window, hidden_dim=hidden_dim, num_classes=num_classes,
        batch_block=8)
    jax.block_until_ready(out)

    # Validate every sample against the per-sample pure-JAX f32 reference.
    for b in range(B):
        ro, rh, rc = ref_forward(x[b], h0[b], c0[b], params, window, hidden_dim)
        assert jnp.allclose(out[b:b + 1], ro, atol=2e-2, rtol=2e-2)
        assert jnp.allclose(nh[b:b + 1], rh, atol=2e-2, rtol=2e-2)
        assert jnp.allclose(nc[b:b + 1], rc, atol=2e-2, rtol=2e-2)

    # Single-sample, module-shaped interface (sample 0).
    x0 = x[0][:, None, :]                       # (W, 1, D)
    h00 = h0[0].reshape(1, 1, hidden_dim)
    c00 = c0[0].reshape(1, 1, hidden_dim)
    o1, (nh1, nc1) = base_lstm_forward(
        x0, h00, c00, 0.0, kdrop, params, window_size=window,
        hidden_dim=hidden_dim, num_classes=num_classes)
    jax.block_until_ready(o1)
    ro, rh, rc = ref_forward(x[0], h0[0], c0[0], params, window, hidden_dim)
    assert jnp.allclose(o1, ro, atol=2e-2, rtol=2e-2)
    assert jnp.allclose(nh1.reshape(1, hidden_dim), rh, atol=2e-2, rtol=2e-2)
    assert jnp.allclose(nc1.reshape(1, hidden_dim), rc, atol=2e-2, rtol=2e-2)

    # Exercise the dropout path (semantics only; torch RNG can't be matched).
    out_d, _ = base_lstm_forward_batched(
        x, h0, c0, dropout_prob=0.3, dropout_key=kdrop, params=params,
        window_size=window, hidden_dim=hidden_dim, num_classes=num_classes,
        batch_block=8)
    jax.block_until_ready(out_d)

    print("KERNEL_OK")
</pallas_src>

<mosaic_0001>
module attributes {stable_mosaic.version = 11 : i64} {
  func.func @base_lstm_kernel(%arg0: i32, %arg1: memref<1x64x10xbf16, #tpu.memory_space<vmem>>, %arg2: memref<8x128xf32, #tpu.memory_space<vmem>>, %arg3: memref<8x128xf32, #tpu.memory_space<vmem>>, %arg4: memref<10x512xbf16, #tpu.memory_space<vmem>>, %arg5: memref<48x512xbf16, #tpu.memory_space<vmem>>, %arg6: memref<48x128xbf16, #tpu.memory_space<vmem>>, %arg7: memref<8x128xf32, #tpu.memory_space<vmem>>, %arg8: memref<3x8x128xf32, #tpu.memory_space<vmem>>) attributes {dimension_semantics = [#tpu.dimension_semantics<parallel>], iteration_bounds = array<i64: 2>, scalar_prefetch = 0 : i64, scratch_operands = 0 : i64, tpu.core_type = #tpu.core_type<tc>, window_params = [{transform_indices = @transform_0, window_bounds = array<i64: 1, 64, 10>}, {transform_indices = @transform_1, window_bounds = array<i64: 8, 128>}, {transform_indices = @transform_2, window_bounds = array<i64: 8, 128>}, {pipeline_mode = #tpu.pipeline_mode<synchronous>, transform_indices = @transform_3, window_bounds = array<i64: 10, 512>}, {pipeline_mode = #tpu.pipeline_mode<synchronous>, transform_indices = @transform_4, window_bounds = array<i64: 48, 512>}, {pipeline_mode = #tpu.pipeline_mode<synchronous>, transform_indices = @transform_5, window_bounds = array<i64: 48, 128>}, {transform_indices = @transform_6, window_bounds = array<i64: 8, 128>}, {transform_indices = @transform_7, window_bounds = array<i64: 3, 8, 128>}]} {
    %c0 = arith.constant 0 : index
    %c0_0 = arith.constant 0 : index
    %c0_1 = arith.constant 0 : index
    %0 = vector.load %arg1[%c0, %c0_0, %c0_1] : memref<1x64x10xbf16, #tpu.memory_space<vmem>>, vector<1x64x10xbf16>
    %1 = vector.shape_cast %0 : vector<1x64x10xbf16> to vector<64x10xbf16>
    %c0_2 = arith.constant 0 : index
    %c0_3 = arith.constant 0 : index
    %2 = vector.load %arg4[%c0_2, %c0_3] : memref<10x512xbf16, #tpu.memory_space<vmem>>, vector<10x512xbf16>
    %cst = arith.constant dense<0.000000e+00> : vector<64x512xf32>
    %3 = tpu.matmul %1, %2, %cst {dimension_numbers = #tpu.dot_dimension_numbers<[1], [0], [0], [1], [0, 0, 1, 1], [], []>} : vector<64x10xbf16>, vector<10x512xbf16>, vector<64x512xf32> -> vector<64x512xf32>
    %c0_4 = arith.constant 0 : index
    %c0_5 = arith.constant 0 : index
    %4 = vector.load %arg5[%c0_4, %c0_5] : memref<48x512xbf16, #tpu.memory_space<vmem>>, vector<48x512xbf16>
    %c0_6 = arith.constant 0 : index
    %c0_7 = arith.constant 0 : index
    %5 = vector.load %arg2[%c0_6, %c0_7] : memref<8x128xf32, #tpu.memory_space<vmem>>, vector<8x128xf32>
    %c0_8 = arith.constant 0 : index
    %c0_9 = arith.constant 0 : index
    %6 = vector.load %arg3[%c0_8, %c0_9] : memref<8x128xf32, #tpu.memory_space<vmem>>, vector<8x128xf32>
    %7 = vector.extract_strided_slice %5 {offsets = [0, 0], sizes = [8, 48], strides = [1, 1]} : vector<8x128xf32> to vector<8x48xf32>
    %8 = arith.truncf %7 : vector<8x48xf32> to vector<8x48xbf16>
    %cst_10 = arith.constant dense<0.000000e+00> : vector<8x512xf32>
    %9 = tpu.matmul %8, %4, %cst_10 {dimension_numbers = #tpu.dot_dimension_numbers<[1], [0], [0], [1], [0, 0, 1, 1], [], []>} : vector<8x48xbf16>, vector<48x512xbf16>, vector<8x512xf32> -> vector<8x512xf32>
    %10 = vector.extract_strided_slice %3 {offsets = [0, 0], sizes = [8, 512], strides = [1, 1]} : vector<64x512xf32> to vector<8x512xf32>
    %11 = arith.addf %10, %9 : vector<8x512xf32>
    %12 = vector.extract_strided_slice %11 {offsets = [0, 0], sizes = [8, 128], strides = [1, 1]} : vector<8x512xf32> to vector<8x128xf32>
    %13 = arith.negf %12 : vector<8x128xf32>
    %14 = math.exp %13 : vector<8x128xf32>
    %cst_11 = arith.constant 1.000000e+00 : f32
    %15 = vector.broadcast %cst_11 : f32 to vector<8x128xf32>
    %16 = arith.addf %15, %14 : vector<8x128xf32>
    %17 = arith.divf %15, %16 : vector<8x128xf32>
    %18 = vector.extract_strided_slice %11 {offsets = [0, 128], sizes = [8, 128], strides = [1, 1]} : vector<8x512xf32> to vector<8x128xf32>
    %19 = arith.negf %18 : vector<8x128xf32>
    %20 = math.exp %19 : vector<8x128xf32>
    %cst_12 = arith.constant 1.000000e+00 : f32
    %21 = vector.broadcast %cst_12 : f32 to vector<8x128xf32>
    %22 = arith.addf %21, %20 : vector<8x128xf32>
    %23 = arith.divf %21, %22 : vector<8x128xf32>
    %24 = vector.extract_strided_slice %11 {offsets = [0, 256], sizes = [8, 128], strides = [1, 1]} : vector<8x512xf32> to vector<8x128xf32>
    %25 = math.tanh %24 : vector<8x128xf32>
    %26 = vector.extract_strided_slice %11 {offsets = [0, 384], sizes = [8, 128], strides = [1, 1]} : vector<8x512xf32> to vector<8x128xf32>
    %27 = arith.negf %26 : vector<8x128xf32>
    %28 = math.exp %27 : vector<8x128xf32>
    %cst_13 = arith.constant 1.000000e+00 : f32
    %29 = vector.broadcast %cst_13 : f32 to vector<8x128xf32>
    %30 = arith.addf %29, %28 : vector<8x128xf32>
    %31 = arith.divf %29, %30 : vector<8x128xf32>
    %32 = arith.mulf %23, %6 : vector<8x128xf32>
    %33 = arith.mulf %17, %25 : vector<8x128xf32>
    %34 = arith.addf %32, %33 : vector<8x128xf32>
    %35 = math.tanh %34 : vector<8x128xf32>
    %36 = arith.mulf %31, %35 : vector<8x128xf32>
    %37 = vector.extract_strided_slice %36 {offsets = [0, 0], sizes = [8, 48], strides = [1, 1]} : vector<8x128xf32> to vector<8x48xf32>
    %38 = arith.truncf %37 : vector<8x48xf32> to vector<8x48xbf16>
    %cst_14 = arith.constant dense<0.000000e+00> : vector<8x512xf32>
    %39 = tpu.matmul %38, %4, %cst_14 {dimension_numbers = #tpu.dot_dimension_numbers<[1], [0], [0], [1], [0, 0, 1, 1], [], []>} : vector<8x48xbf16>, vector<48x512xbf16>, vector<8x512xf32> -> vector<8x512xf32>
    %40 = vector.extract_strided_slice %3 {offsets = [8, 0], sizes = [8, 512], strides = [1, 1]} : vector<64x512xf32> to vector<8x512xf32>
    %41 = arith.addf %40, %39 : vector<8x512xf32>
    %42 = vector.extract_strided_slice %41 {offsets = [0, 0], sizes = [8, 128], strides = [1, 1]} : vector<8x512xf32> to vector<8x128xf32>
    %43 = arith.negf %42 : vector<8x128xf32>
    %44 = math.exp %43 : vector<8x128xf32>
    %cst_15 = arith.constant 1.000000e+00 : f32
    %45 = vector.broadcast %cst_15 : f32 to vector<8x128xf32>
    %46 = arith.addf %45, %44 : vector<8x128xf32>
    %47 = arith.divf %45, %46 : vector<8x128xf32>
    %48 = vector.extract_strided_slice %41 {offsets = [0, 128], sizes = [8, 128], strides = [1, 1]} : vector<8x512xf32> to vector<8x128xf32>
    %49 = arith.negf %48 : vector<8x128xf32>
    %50 = math.exp %49 : vector<8x128xf32>
    %cst_16 = arith.constant 1.000000e+00 : f32
    %51 = vector.broadcast %cst_16 : f32 to vector<8x128xf32>
    %52 = arith.addf %51, %50 : vector<8x128xf32>
    %53 = arith.divf %51, %52 : vector<8x128xf32>
    %54 = vector.extract_strided_slice %41 {offsets = [0, 256], sizes = [8, 128], strides = [1, 1]} : vector<8x512xf32> to vector<8x128xf32>
    %55 = math.tanh %54 : vector<8x128xf32>
    %56 = vector.extract_strided_slice %41 {offsets = [0, 384], sizes = [8, 128], strides = [1, 1]} : vector<8x512xf32> to vector<8x128xf32>
    %57 = arith.negf %56 : vector<8x128xf32>
    %58 = math.exp %57 : vector<8x128xf32>
    %cst_17 = arith.constant 1.000000e+00 : f32
    %59 = vector.broadcast %cst_17 : f32 to vector<8x128xf32>
    %60 = arith.addf %59, %58 : vector<8x128xf32>
    %61 = arith.divf %59, %60 : vector<8x128xf32>
    %62 = arith.mulf %53, %34 : vector<8x128xf32>
    %63 = arith.mulf %47, %55 : vector<8x128xf32>
    %64 = arith.addf %62, %63 : vector<8x128xf32>
    %65 = math.tanh %64 : vector<8x128xf32>
    %66 = arith.mulf %61, %65 : vector<8x128xf32>
    %67 = vector.extract_strided_slice %66 {offsets = [0, 0], sizes = [8, 48], strides = [1, 1]} : vector<8x128xf32> to vector<8x48xf32>
    %68 = arith.truncf %67 : vector<8x48xf32> to vector<8x48xbf16>
    %cst_18 = arith.constant dense<0.000000e+00> : vector<8x512xf32>
    %69 = tpu.matmul %68, %4, %cst_18 {dimension_numbers = #tpu.dot_dimension_numbers<[1], [0], [0], [1], [0, 0, 1, 1], [], []>} : vector<8x48xbf16>, vector<48x512xbf16>, vector<8x512xf32> -> vector<8x512xf32>
    %70 = vector.extract_strided_slice %3 {offsets = [16, 0], sizes = [8, 512], strides = [1, 1]} : vector<64x512xf32> to vector<8x512xf32>
    %71 = arith.addf %70, %69 : vector<8x512xf32>
    %72 = vector.extract_strided_slice %71 {offsets = [0, 0], sizes = [8, 128], strides = [1, 1]} : vector<8x512xf32> to vector<8x128xf32>
    %73 = arith.negf %72 : vector<8x128xf32>
    %74 = math.exp %73 : vector<8x128xf32>
    %cst_19 = arith.constant 1.000000e+00 : f32
    %75 = vector.broadcast %cst_19 : f32 to vector<8x128xf32>
    %76 = arith.addf %75, %74 : vector<8x128xf32>
    %77 = arith.divf %75, %76 : vector<8x128xf32>
    %78 = vector.extract_strided_slice %71 {offsets = [0, 128], sizes = [8, 128], strides = [1, 1]} : vector<8x512xf32> to vector<8x128xf32>
    %79 = arith.negf %78 : vector<8x128xf32>
    %80 = math.exp %79 : vector<8x128xf32>
    %cst_20 = arith.constant 1.000000e+00 : f32
    %81 = vector.broadcast %cst_20 : f32 to vector<8x128xf32>
    %82 = arith.addf %81, %80 : vector<8x128xf32>
    %83 = arith.divf %81, %82 : vector<8x128xf32>
    %84 = vector.extract_strided_slice %71 {offsets = [0, 256], sizes = [8, 128], strides = [1, 1]} : vector<8x512xf32> to vector<8x128xf32>
    %85 = math.tanh %84 : vector<8x128xf32>
    %86 = vector.extract_strided_slice %71 {offsets = [0, 384], sizes = [8, 128], strides = [1, 1]} : vector<8x512xf32> to vector<8x128xf32>
    %87 = arith.negf %86 : vector<8x128xf32>
    %88 = math.exp %87 : vector<8x128xf32>
    %cst_21 = arith.constant 1.000000e+00 : f32
    %89 = vector.broadcast %cst_21 : f32 to vector<8x128xf32>
    %90 = arith.addf %89, %88 : vector<8x128xf32>
    %91 = arith.divf %89, %90 : vector<8x128xf32>
    %92 = arith.mulf %83, %64 : vector<8x128xf32>
    %93 = arith.mulf %77, %85 : vector<8x128xf32>
    %94 = arith.addf %92, %93 : vector<8x128xf32>
    %95 = math.tanh %94 : vector<8x128xf32>
    %96 = arith.mulf %91, %95 : vector<8x128xf32>
    %97 = vector.extract_strided_slice %96 {offsets = [0, 0], sizes = [8, 48], strides = [1, 1]} : vector<8x128xf32> to vector<8x48xf32>
    %98 = arith.truncf %97 : vector<8x48xf32> to vector<8x48xbf16>
    %cst_22 = arith.constant dense<0.000000e+00> : vector<8x512xf32>
    %99 = tpu.matmul %98, %4, %cst_22 {dimension_numbers = #tpu.dot_dimension_numbers<[1], [0], [0], [1], [0, 0, 1, 1], [], []>} : vector<8x48xbf16>, vector<48x512xbf16>, vector<8x512xf32> -> vector<8x512xf32>
    %100 = vector.extract_strided_slice %3 {offsets = [24, 0], sizes = [8, 512], strides = [1, 1]} : vector<64x512xf32> to vector<8x512xf32>
    %101 = arith.addf %100, %99 : vector<8x512xf32>
    %102 = vector.extract_strided_slice %101 {offsets = [0, 0], sizes = [8, 128], strides = [1, 1]} : vector<8x512xf32> to vector<8x128xf32>
    %103 = arith.negf %102 : vector<8x128xf32>
    %104 = math.exp %103 : vector<8x128xf32>
    %cst_23 = arith.constant 1.000000e+00 : f32
    %105 = vector.broadcast %cst_23 : f32 to vector<8x128xf32>
    %106 = arith.addf %105, %104 : vector<8x128xf32>
    %107 = arith.divf %105, %106 : vector<8x128xf32>
    %108 = vector.extract_strided_slice %101 {offsets = [0, 128], sizes = [8, 128], strides = [1, 1]} : vector<8x512xf32> to vector<8x128xf32>
    %109 = arith.negf %108 : vector<8x128xf32>
    %110 = math.exp %109 : vector<8x128xf32>
    %cst_24 = arith.constant 1.000000e+00 : f32
    %111 = vector.broadcast %cst_24 : f32 to vector<8x128xf32>
    %112 = arith.addf %111, %110 : vector<8x128xf32>
    %113 = arith.divf %111, %112 : vector<8x128xf32>
    %114 = vector.extract_strided_slice %101 {offsets = [0, 256], sizes = [8, 128], strides = [1, 1]} : vector<8x512xf32> to vector<8x128xf32>
    %115 = math.tanh %114 : vector<8x128xf32>
    %116 = vector.extract_strided_slice %101 {offsets = [0, 384], sizes = [8, 128], strides = [1, 1]} : vector<8x512xf32> to vector<8x128xf32>
    %117 = arith.negf %116 : vector<8x128xf32>
    %118 = math.exp %117 : vector<8x128xf32>
    %cst_25 = arith.constant 1.000000e+00 : f32
    %119 = vector.broadcast %cst_25 : f32 to vector<8x128xf32>
    %120 = arith.addf %119, %118 : vector<8x128xf32>
    %121 = arith.divf %119, %120 : vector<8x128xf32>
    %122 = arith.mulf %113, %94 : vector<8x128xf32>
    %123 = arith.mulf %107, %115 : vector<8x128xf32>
    %124 = arith.addf %122, %123 : vector<8x128xf32>
    %125 = math.tanh %124 : vector<8x128xf32>
    %126 = arith.mulf %121, %125 : vector<8x128xf32>
    %127 = vector.extract_strided_slice %126 {offsets = [0, 0], sizes = [8, 48], strides = [1, 1]} : vector<8x128xf32> to vector<8x48xf32>
    %128 = arith.truncf %127 : vector<8x48xf32> to vector<8x48xbf16>
    %cst_26 = arith.constant dense<0.000000e+00> : vector<8x512xf32>
    %129 = tpu.matmul %128, %4, %cst_26 {dimension_numbers = #tpu.dot_dimension_numbers<[1], [0], [0], [1], [0, 0, 1, 1], [], []>} : vector<8x48xbf16>, vector<48x512xbf16>, vector<8x512xf32> -> vector<8x512xf32>
    %130 = vector.extract_strided_slice %3 {offsets = [32, 0], sizes = [8, 512], strides = [1, 1]} : vector<64x512xf32> to vector<8x512xf32>
    %131 = arith.addf %130, %129 : vector<8x512xf32>
    %132 = vector.extract_strided_slice %131 {offsets = [0, 0], sizes = [8, 128], strides = [1, 1]} : vector<8x512xf32> to vector<8x128xf32>
    %133 = arith.negf %132 : vector<8x128xf32>
    %134 = math.exp %133 : vector<8x128xf32>
    %cst_27 = arith.constant 1.000000e+00 : f32
    %135 = vector.broadcast %cst_27 : f32 to vector<8x128xf32>
    %136 = arith.addf %135, %134 : vector<8x128xf32>
    %137 = arith.divf %135, %136 : vector<8x128xf32>
    %138 = vector.extract_strided_slice %131 {offsets = [0, 128], sizes = [8, 128], strides = [1, 1]} : vector<8x512xf32> to vector<8x128xf32>
    %139 = arith.negf %138 : vector<8x128xf32>
    %140 = math.exp %139 : vector<8x128xf32>
    %cst_28 = arith.constant 1.000000e+00 : f32
    %141 = vector.broadcast %cst_28 : f32 to vector<8x128xf32>
    %142 = arith.addf %141, %140 : vector<8x128xf32>
    %143 = arith.divf %141, %142 : vector<8x128xf32>
    %144 = vector.extract_strided_slice %131 {offsets = [0, 256], sizes = [8, 128], strides = [1, 1]} : vector<8x512xf32> to vector<8x128xf32>
    %145 = math.tanh %144 : vector<8x128xf32>
    %146 = vector.extract_strided_slice %131 {offsets = [0, 384], sizes = [8, 128], strides = [1, 1]} : vector<8x512xf32> to vector<8x128xf32>
    %147 = arith.negf %146 : vector<8x128xf32>
    %148 = math.exp %147 : vector<8x128xf32>
    %cst_29 = arith.constant 1.000000e+00 : f32
    %149 = vector.broadcast %cst_29 : f32 to vector<8x128xf32>
    %150 = arith.addf %149, %148 : vector<8x128xf32>
    %151 = arith.divf %149, %150 : vector<8x128xf32>
    %152 = arith.mulf %143, %124 : vector<8x128xf32>
    %153 = arith.mulf %137, %145 : vector<8x128xf32>
    %154 = arith.addf %152, %153 : vector<8x128xf32>
    %155 = math.tanh %154 : vector<8x128xf32>
    %156 = arith.mulf %151, %155 : vector<8x128xf32>
    %157 = vector.extract_strided_slice %156 {offsets = [0, 0], sizes = [8, 48], strides = [1, 1]} : vector<8x128xf32> to vector<8x48xf32>
    %158 = arith.truncf %157 : vector<8x48xf32> to vector<8x48xbf16>
    %cst_30 = arith.constant dense<0.000000e+00> : vector<8x512xf32>
    %159 = tpu.matmul %158, %4, %cst_30 {dimension_numbers = #tpu.dot_dimension_numbers<[1], [0], [0], [1], [0, 0, 1, 1], [], []>} : vector<8x48xbf16>, vector<48x512xbf16>, vector<8x512xf32> -> vector<8x512xf32>
    %160 = vector.extract_strided_slice %3 {offsets = [40, 0], sizes = [8, 512], strides = [1, 1]} : vector<64x512xf32> to vector<8x512xf32>
    %161 = arith.addf %160, %159 : vector<8x512xf32>
    %162 = vector.extract_strided_slice %161 {offsets = [0, 0], sizes = [8, 128], strides = [1, 1]} : vector<8x512xf32> to vector<8x128xf32>
    %163 = arith.negf %162 : vector<8x128xf32>
    %164 = math.exp %163 : vector<8x128xf32>
    %cst_31 = arith.constant 1.000000e+00 : f32
    %165 = vector.broadcast %cst_31 : f32 to vector<8x128xf32>
    %166 = arith.addf %165, %164 : vector<8x128xf32>
    %167 = arith.divf %165, %166 : vector<8x128xf32>
    %168 = vector.extract_strided_slice %161 {offsets = [0, 128], sizes = [8, 128], strides = [1, 1]} : vector<8x512xf32> to vector<8x128xf32>
    %169 = arith.negf %168 : vector<8x128xf32>
    %170 = math.exp %169 : vector<8x128xf32>
    %cst_32 = arith.constant 1.000000e+00 : f32
    %171 = vector.broadcast %cst_32 : f32 to vector<8x128xf32>
    %172 = arith.addf %171, %170 : vector<8x128xf32>
    %173 = arith.divf %171, %172 : vector<8x128xf32>
    %174 = vector.extract_strided_slice %161 {offsets = [0, 256], sizes = [8, 128], strides = [1, 1]} : vector<8x512xf32> to vector<8x128xf32>
    %175 = math.tanh %174 : vector<8x128xf32>
    %176 = vector.extract_strided_slice %161 {offsets = [0, 384], sizes = [8, 128], strides = [1, 1]} : vector<8x512xf32> to vector<8x128xf32>
    %177 = arith.negf %176 : vector<8x128xf32>
    %178 = math.exp %177 : vector<8x128xf32>
    %cst_33 = arith.constant 1.000000e+00 : f32
    %179 = vector.broadcast %cst_33 : f32 to vector<8x128xf32>
    %180 = arith.addf %179, %178 : vector<8x128xf32>
    %181 = arith.divf %179, %180 : vector<8x128xf32>
    %182 = arith.mulf %173, %154 : vector<8x128xf32>
    %183 = arith.mulf %167, %175 : vector<8x128xf32>
    %184 = arith.addf %182, %183 : vector<8x128xf32>
    %185 = math.tanh %184 : vector<8x128xf32>
    %186 = arith.mulf %181, %185 : vector<8x128xf32>
    %187 = vector.extract_strided_slice %186 {offsets = [0, 0], sizes = [8, 48], strides = [1, 1]} : vector<8x128xf32> to vector<8x48xf32>
    %188 = arith.truncf %187 : vector<8x48xf32> to vector<8x48xbf16>
    %cst_34 = arith.constant dense<0.000000e+00> : vector<8x512xf32>
    %189 = tpu.matmul %188, %4, %cst_34 {dimension_numbers = #tpu.dot_dimension_numbers<[1], [0], [0], [1], [0, 0, 1, 1], [], []>} : vector<8x48xbf16>, vector<48x512xbf16>, vector<8x512xf32> -> vector<8x512xf32>
    %190 = vector.extract_strided_slice %3 {offsets = [48, 0], sizes = [8, 512], strides = [1, 1]} : vector<64x512xf32> to vector<8x512xf32>
    %191 = arith.addf %190, %189 : vector<8x512xf32>
    %192 = vector.extract_strided_slice %191 {offsets = [0, 0], sizes = [8, 128], strides = [1, 1]} : vector<8x512xf32> to vector<8x128xf32>
    %193 = arith.negf %192 : vector<8x128xf32>
    %194 = math.exp %193 : vector<8x128xf32>
    %cst_35 = arith.constant 1.000000e+00 : f32
    %195 = vector.broadcast %cst_35 : f32 to vector<8x128xf32>
    %196 = arith.addf %195, %194 : vector<8x128xf32>
    %197 = arith.divf %195, %196 : vector<8x128xf32>
    %198 = vector.extract_strided_slice %191 {offsets = [0, 128], sizes = [8, 128], strides = [1, 1]} : vector<8x512xf32> to vector<8x128xf32>
    %199 = arith.negf %198 : vector<8x128xf32>
    %200 = math.exp %199 : vector<8x128xf32>
    %cst_36 = arith.constant 1.000000e+00 : f32
    %201 = vector.broadcast %cst_36 : f32 to vector<8x128xf32>
    %202 = arith.addf %201, %200 : vector<8x128xf32>
    %203 = arith.divf %201, %202 : vector<8x128xf32>
    %204 = vector.extract_strided_slice %191 {offsets = [0, 256], sizes = [8, 128], strides = [1, 1]} : vector<8x512xf32> to vector<8x128xf32>
    %205 = math.tanh %204 : vector<8x128xf32>
    %206 = vector.extract_strided_slice %191 {offsets = [0, 384], sizes = [8, 128], strides = [1, 1]} : vector<8x512xf32> to vector<8x128xf32>
    %207 = arith.negf %206 : vector<8x128xf32>
    %208 = math.exp %207 : vector<8x128xf32>
    %cst_37 = arith.constant 1.000000e+00 : f32
    %209 = vector.broadcast %cst_37 : f32 to vector<8x128xf32>
    %210 = arith.addf %209, %208 : vector<8x128xf32>
    %211 = arith.divf %209, %210 : vector<8x128xf32>
    %212 = arith.mulf %203, %184 : vector<8x128xf32>
    %213 = arith.mulf %197, %205 : vector<8x128xf32>
    %214 = arith.addf %212, %213 : vector<8x128xf32>
    %215 = math.tanh %214 : vector<8x128xf32>
    %216 = arith.mulf %211, %215 : vector<8x128xf32>
    %217 = vector.extract_strided_slice %216 {offsets = [0, 0], sizes = [8, 48], strides = [1, 1]} : vector<8x128xf32> to vector<8x48xf32>
    %218 = arith.truncf %217 : vector<8x48xf32> to vector<8x48xbf16>
    %cst_38 = arith.constant dense<0.000000e+00> : vector<8x512xf32>
    %219 = tpu.matmul %218, %4, %cst_38 {dimension_numbers = #tpu.dot_dimension_numbers<[1], [0], [0], [1], [0, 0, 1, 1], [], []>} : vector<8x48xbf16>, vector<48x512xbf16>, vector<8x512xf32> -> vector<8x512xf32>
    %220 = vector.extract_strided_slice %3 {offsets = [56, 0], sizes = [8, 512], strides = [1, 1]} : vector<64x512xf32> to vector<8x512xf32>
    %221 = arith.addf %220, %219 : vector<8x512xf32>
    %222 = vector.extract_strided_slice %221 {offsets = [0, 0], sizes = [8, 128], strides = [1, 1]} : vector<8x512xf32> to vector<8x128xf32>
    %223 = arith.negf %222 : vector<8x128xf32>
    %224 = math.exp %223 : vector<8x128xf32>
    %cst_39 = arith.constant 1.000000e+00 : f32
    %225 = vector.broadcast %cst_39 : f32 to vector<8x128xf32>
    %226 = arith.addf %225, %224 : vector<8x128xf32>
    %227 = arith.divf %225, %226 : vector<8x128xf32>
    %228 = vector.extract_strided_slice %221 {offsets = [0, 128], sizes = [8, 128], strides = [1, 1]} : vector<8x512xf32> to vector<8x128xf32>
    %229 = arith.negf %228 : vector<8x128xf32>
    %230 = math.exp %229 : vector<8x128xf32>
    %cst_40 = arith.constant 1.000000e+00 : f32
    %231 = vector.broadcast %cst_40 : f32 to vector<8x128xf32>
    %232 = arith.addf %231, %230 : vector<8x128xf32>
    %233 = arith.divf %231, %232 : vector<8x128xf32>
    %234 = vector.extract_strided_slice %221 {offsets = [0, 256], sizes = [8, 128], strides = [1, 1]} : vector<8x512xf32> to vector<8x128xf32>
    %235 = math.tanh %234 : vector<8x128xf32>
    %236 = vector.extract_strided_slice %221 {offsets = [0, 384], sizes = [8, 128], strides = [1, 1]} : vector<8x512xf32> to vector<8x128xf32>
    %237 = arith.negf %236 : vector<8x128xf32>
    %238 = math.exp %237 : vector<8x128xf32>
    %cst_41 = arith.constant 1.000000e+00 : f32
    %239 = vector.broadcast %cst_41 : f32 to vector<8x128xf32>
    %240 = arith.addf %239, %238 : vector<8x128xf32>
    %241 = arith.divf %239, %240 : vector<8x128xf32>
    %242 = arith.mulf %233, %214 : vector<8x128xf32>
    %243 = arith.mulf %227, %235 : vector<8x128xf32>
    %244 = arith.addf %242, %243 : vector<8x128xf32>
    %245 = math.tanh %244 : vector<8x128xf32>
    %246 = arith.mulf %241, %245 : vector<8x128xf32>
    %c0_42 = arith.constant 0 : index
    %c0_43 = arith.constant 0 : index
    %247 = vector.load %arg7[%c0_42, %c0_43] : memref<8x128xf32, #tpu.memory_space<vmem>>, vector<8x128xf32>
    %248 = arith.mulf %246, %247 : vector<8x128xf32>
    %249 = arith.mulf %36, %248 : vector<8x128xf32>
    %cst_44 = arith.constant dense<0.000000e+00> : vector<8xf32>
    %250 = vector.multi_reduction <add>, %249, %cst_44 [1] : vector<8x128xf32> to vector<8xf32>
    %251 = vector.shape_cast %250 : vector<8xf32> to vector<8x1xf32>
    %252 = arith.mulf %66, %248 : vector<8x128xf32>
    %cst_45 = arith.constant dense<0.000000e+00> : vector<8xf32>
    %253 = vector.multi_reduction <add>, %252, %cst_45 [1] : vector<8x128xf32> to vector<8xf32>
    %254 = vector.shape_cast %253 : vector<8xf32> to vector<8x1xf32>
    %255 = arith.mulf %96, %248 : vector<8x128xf32>
    %cst_46 = arith.constant dense<0.000000e+00> : vector<8xf32>
    %256 = vector.multi_reduction <add>, %255, %cst_46 [1] : vector<8x128xf32> to vector<8xf32>
    %257 = vector.shape_cast %256 : vector<8xf32> to vector<8x1xf32>
    %258 = arith.mulf %126, %248 : vector<8x128xf32>
    %cst_47 = arith.constant dense<0.000000e+00> : vector<8xf32>
    %259 = vector.multi_reduction <add>, %258, %cst_47 [1] : vector<8x128xf32> to vector<8xf32>
    %260 = vector.shape_cast %259 : vector<8xf32> to vector<8x1xf32>
    %261 = arith.mulf %156, %248 : vector<8x128xf32>
    %cst_48 = arith.constant dense<0.000000e+00> : vector<8xf32>
    %262 = vector.multi_reduction <add>, %261, %cst_48 [1] : vector<8x128xf32> to vector<8xf32>
    %263 = vector.shape_cast %262 : vector<8xf32> to vector<8x1xf32>
    %264 = arith.mulf %186, %248 : vector<8x128xf32>
    %cst_49 = arith.constant dense<0.000000e+00> : vector<8xf32>
    %265 = vector.multi_reduction <add>, %264, %cst_49 [1] : vector<8x128xf32> to vector<8xf32>
    %266 = vector.shape_cast %265 : vector<8xf32> to vector<8x1xf32>
    %267 = arith.mulf %216, %248 : vector<8x128xf32>
    %cst_50 = arith.constant dense<0.000000e+00> : vector<8xf32>
    %268 = vector.multi_reduction <add>, %267, %cst_50 [1] : vector<8x128xf32> to vector<8xf32>
    %269 = vector.shape_cast %268 : vector<8xf32> to vector<8x1xf32>
    %270 = arith.mulf %246, %248 : vector<8x128xf32>
    %cst_51 = arith.constant dense<0.000000e+00> : vector<8xf32>
    %271 = vector.multi_reduction <add>, %270, %cst_51 [1] : vector<8x128xf32> to vector<8xf32>
    %272 = vector.shape_cast %271 : vector<8xf32> to vector<8x1xf32>
    %273 = arith.maximumf %251, %254 : vector<8x1xf32>
    %274 = arith.maximumf %273, %257 : vector<8x1xf32>
    %275 = arith.maximumf %274, %260 : vector<8x1xf32>
    %276 = arith.maximumf %275, %263 : vector<8x1xf32>
    %277 = arith.maximumf %276, %266 : vector<8x1xf32>
    %278 = arith.maximumf %277, %269 : vector<8x1xf32>
    %279 = arith.maximumf %278, %272 : vector<8x1xf32>
    %280 = arith.subf %251, %279 : vector<8x1xf32>
    %281 = math.exp %280 : vector<8x1xf32>
    %282 = arith.subf %254, %279 : vector<8x1xf32>
    %283 = math.exp %282 : vector<8x1xf32>
    %284 = arith.subf %257, %279 : vector<8x1xf32>
    %285 = math.exp %284 : vector<8x1xf32>
    %286 = arith.subf %260, %279 : vector<8x1xf32>
    %287 = math.exp %286 : vector<8x1xf32>
    %288 = arith.subf %263, %279 : vector<8x1xf32>
    %289 = math.exp %288 : vector<8x1xf32>
    %290 = arith.subf %266, %279 : vector<8x1xf32>
    %291 = math.exp %290 : vector<8x1xf32>
    %292 = arith.subf %269, %279 : vector<8x1xf32>
    %293 = math.exp %292 : vector<8x1xf32>
    %294 = arith.subf %272, %279 : vector<8x1xf32>
    %295 = math.exp %294 : vector<8x1xf32>
    %296 = arith.addf %281, %283 : vector<8x1xf32>
    %297 = arith.addf %296, %285 : vector<8x1xf32>
    %298 = arith.addf %297, %287 : vector<8x1xf32>
    %299 = arith.addf %298, %289 : vector<8x1xf32>
    %300 = arith.addf %299, %291 : vector<8x1xf32>
    %301 = arith.addf %300, %293 : vector<8x1xf32>
    %302 = arith.addf %301, %295 : vector<8x1xf32>
    %303 = tpu.reciprocal %302 {approx = true} : vector<8x1xf32> -> vector<8x1xf32>
    %304 = arith.mulf %281, %303 : vector<8x1xf32>
    %305 = vector.broadcast %304 : vector<8x1xf32> to vector<8x128xf32>
    %306 = arith.mulf %305, %36 : vector<8x128xf32>
    %307 = arith.mulf %283, %303 : vector<8x1xf32>
    %308 = vector.broadcast %307 : vector<8x1xf32> to vector<8x128xf32>
    %309 = arith.mulf %308, %66 : vector<8x128xf32>
    %310 = arith.addf %306, %309 : vector<8x128xf32>
    %311 = arith.mulf %285, %303 : vector<8x1xf32>
    %312 = vector.broadcast %311 : vector<8x1xf32> to vector<8x128xf32>
    %313 = arith.mulf %312, %96 : vector<8x128xf32>
    %314 = arith.addf %310, %313 : vector<8x128xf32>
    %315 = arith.mulf %287, %303 : vector<8x1xf32>
    %316 = vector.broadcast %315 : vector<8x1xf32> to vector<8x128xf32>
    %317 = arith.mulf %316, %126 : vector<8x128xf32>
    %318 = arith.addf %314, %317 : vector<8x128xf32>
    %319 = arith.mulf %289, %303 : vector<8x1xf32>
    %320 = vector.broadcast %319 : vector<8x1xf32> to vector<8x128xf32>
    %321 = arith.mulf %320, %156 : vector<8x128xf32>
    %322 = arith.addf %318, %321 : vector<8x128xf32>
    %323 = arith.mulf %291, %303 : vector<8x1xf32>
    %324 = vector.broadcast %323 : vector<8x1xf32> to vector<8x128xf32>
    %325 = arith.mulf %324, %186 : vector<8x128xf32>
    %326 = arith.addf %322, %325 : vector<8x128xf32>
    %327 = arith.mulf %293, %303 : vector<8x1xf32>
    %328 = vector.broadcast %327 : vector<8x1xf32> to vector<8x128xf32>
    %329 = arith.mulf %328, %216 : vector<8x128xf32>
    %330 = arith.addf %326, %329 : vector<8x128xf32>
    %331 = arith.mulf %295, %303 : vector<8x1xf32>
    %332 = vector.broadcast %331 : vector<8x1xf32> to vector<8x128xf32>
    %333 = arith.mulf %332, %246 : vector<8x128xf32>
    %334 = arith.addf %330, %333 : vector<8x128xf32>
    %335 = vector.extract_strided_slice %334 {offsets = [0, 0], sizes = [8, 48], strides = [1, 1]} : vector<8x128xf32> to vector<8x48xf32>
    %336 = arith.truncf %335 : vector<8x48xf32> to vector<8x48xbf16>
    %c0_52 = arith.constant 0 : index
    %c0_53 = arith.constant 0 : index
    %337 = vector.load %arg6[%c0_52, %c0_53] : memref<48x128xbf16, #tpu.memory_space<vmem>>, vector<48x128xbf16>
    %cst_54 = arith.constant dense<0.000000e+00> : vector<8x128xf32>
    %338 = tpu.matmul %336, %337, %cst_54 {dimension_numbers = #tpu.dot_dimension_numbers<[1], [0], [0], [1], [0, 0, 1, 1], [], []>} : vector<8x48xbf16>, vector<48x128xbf16>, vector<8x128xf32> -> vector<8x128xf32>
    %c0_55 = arith.constant 0 : index
    %c0_56 = arith.constant 0 : index
    %c0_57 = arith.constant 0 : index
    %339 = vector.load %arg8[%c0_55, %c0_56, %c0_57] : memref<3x8x128xf32, #tpu.memory_space<vmem>>, vector<1x8x128xf32>
    %340 = vector.shape_cast %339 : vector<1x8x128xf32> to vector<8x128xf32>
    %341 = vector.shape_cast %338 : vector<8x128xf32> to vector<1x8x128xf32>
    tpu.vector_store %arg8[%c0_55, %c0_56, %c0_57], %341 {strides = array<i32>} : memref<3x8x128xf32, #tpu.memory_space<vmem>>, vector<1x8x128xf32>,
    %c1 = arith.constant 1 : index
    %c0_58 = arith.constant 0 : index
    %c0_59 = arith.constant 0 : index
    %342 = vector.load %arg8[%c1, %c0_58, %c0_59] : memref<3x8x128xf32, #tpu.memory_space<vmem>>, vector<1x8x128xf32>
    %343 = vector.shape_cast %342 : vector<1x8x128xf32> to vector<8x128xf32>
    %344 = vector.shape_cast %334 : vector<8x128xf32> to vector<1x8x128xf32>
    tpu.vector_store %arg8[%c1, %c0_58, %c0_59], %344 {strides = array<i32>} : memref<3x8x128xf32, #tpu.memory_space<vmem>>, vector<1x8x128xf32>,
    %c2 = arith.constant 2 : index
    %c0_60 = arith.constant 0 : index
    %c0_61 = arith.constant 0 : index
    %345 = vector.load %arg8[%c2, %c0_60, %c0_61] : memref<3x8x128xf32, #tpu.memory_space<vmem>>, vector<1x8x128xf32>
    %346 = vector.shape_cast %345 : vector<1x8x128xf32> to vector<8x128xf32>
    %347 = vector.shape_cast %244 : vector<8x128xf32> to vector<1x8x128xf32>
    tpu.vector_store %arg8[%c2, %c0_60, %c0_61], %347 {strides = array<i32>} : memref<3x8x128xf32, #tpu.memory_space<vmem>>, vector<1x8x128xf32>,
    return
  }
  func.func @transform_0(%arg0: i32) -> (i32, i32, i32) {
    %c0_i32 = arith.constant 0 : i32
    %c0_i32_0 = arith.constant 0 : i32
    %c0_i32_1 = arith.constant 0 : i32
    return %arg0, %c0_i32, %c0_i32_0 : i32, i32, i32
  }
  func.func @transform_1(%arg0: i32) -> (i32, i32) {
    %c0_i32 = arith.constant 0 : i32
    %c0_i32_0 = arith.constant 0 : i32
    return %arg0, %c0_i32 : i32, i32
  }
  func.func @transform_2(%arg0: i32) -> (i32, i32) {
    %c0_i32 = arith.constant 0 : i32
    %c0_i32_0 = arith.constant 0 : i32
    return %arg0, %c0_i32 : i32, i32
  }
  func.func @transform_3(%arg0: i32) -> (i32, i32) {
    %c0_i32 = arith.constant 0 : i32
    %c0_i32_0 = arith.constant 0 : i32
    %c0_i32_1 = arith.constant 0 : i32
    return %c0_i32, %c0_i32_0 : i32, i32
  }
  func.func @transform_4(%arg0: i32) -> (i32, i32) {
    %c0_i32 = arith.constant 0 : i32
    %c0_i32_0 = arith.constant 0 : i32
    %c0_i32_1 = arith.constant 0 : i32
    return %c0_i32, %c0_i32_0 : i32, i32
  }
  func.func @transform_5(%arg0: i32) -> (i32, i32) {
    %c0_i32 = arith.constant 0 : i32
    %c0_i32_0 = arith.constant 0 : i32
    %c0_i32_1 = arith.constant 0 : i32
    return %c0_i32, %c0_i32_0 : i32, i32
  }
  func.func @transform_6(%arg0: i32) -> (i32, i32) {
    %c0_i32 = arith.constant 0 : i32
    %c0_i32_0 = arith.constant 0 : i32
    return %arg0, %c0_i32 : i32, i32
  }
  func.func @transform_7(%arg0: i32) -> (i32, i32, i32) {
    %c0_i32 = arith.constant 0 : i32
    %c0_i32_0 = arith.constant 0 : i32
    %c0_i32_1 = arith.constant 0 : i32
    return %c0_i32, %arg0, %c0_i32_0 : i32, i32, i32
  }
}

</mosaic_0001>

<llo_original>
// kernel: tpu_custom_call.1
$region0: #{tpu_custom_call.1}
  #allocation0 [shape = 'u32[]', space=smem, size = 0x4, offset = 0x4, fixed_abs, tag = 'smem constant byte address 0x4 - core index']
  #allocation1 [shape = 'u32[72,128]{1,0:T(1,128)}', space=vmem, size = 0x9000, scoped, tag = 'internal scratch']
  %s0 = inlined_call_operand.vmem [shape: bf16[2,64,10], index: 0, kind: input, shape index: {}]
  %s1 = inlined_call_operand.vmem [shape: f32[16,128], index: 1, kind: input, shape index: {}]
  %s2 = inlined_call_operand.hbm [shape: f32[16,128], index: 2, kind: input, shape index: {}]
  %s3 = inlined_call_operand.vmem [shape: bf16[10,512], index: 3, kind: input, shape index: {}]
  %s4 = inlined_call_operand.hbm [shape: bf16[48,512], index: 4, kind: input, shape index: {}]
  %s5 = inlined_call_operand.vmem [shape: bf16[48,128], index: 5, kind: input, shape index: {}]
  %s6 = inlined_call_operand.hbm [shape: f32[16,128], index: 6, kind: input, shape index: {}]
  %s7 = inlined_call_operand.hbm [shape: f32[3,16,128], index: 7, kind: output, shape index: {}]
  %s8 = sld [smem:[#allocation0]]
  $region73: #{tpu_custom_call.1} parent=0
    _
  %s10 = ssub.s32 1, %s8
  %s11 = scalar_select 0, %s10, %s8
  $region1: #{tpu_custom_call.1} parent=0
    #allocation2 [shape = 'u8[8192]{0}', space=vmem, size = 0x2000, scoped, tag = 'input window, operand 2']
    #allocation3 [shape = 's32[2]{0}', space=sflag, size = 0x8, scoped, tag = 'scoped memory for tpu_custom_call.1']
    #allocation4 [shape = 's32[2]{0}', space=sflag, size = 0x8, scoped, tag = 'scoped memory for tpu_custom_call.1']
    #allocation5 [shape = 'u8[49152]{0}', space=vmem, size = 0xc000, scoped, tag = 'input window, operand 4, single buffered']
    #allocation6 [shape = 's32[1]{0}', space=sflag, size = 0x4, scoped, tag = 'scoped memory for tpu_custom_call.1']
    #allocation7 [shape = 'u8[8192]{0}', space=vmem, size = 0x2000, scoped, tag = 'input window, operand 6']
    #allocation8 [shape = 'u8[24576]{0}', space=vmem, size = 0x6000, scoped, tag = 'output window, operand 0']
    %12 = vsyncpa [#allocation3], 0
    %s13 = scalar_lea.sflag [#allocation3], 1
    %14 = vsyncpa %s13, 0
    %15 = vsyncpa [#allocation6], 0
    %16 = vsyncpa [#allocation4], 0
    %s17 = scalar_lea.sflag [#allocation4], 1
    %18 = vsyncpa %s17, 0
    loop: start=0, step=1, limit=4
    $region2: #{tpu_custom_call.1} parent=1 // loop_pre_header
      _
    $region3: #{tpu_custom_call.1} parent=1 // loop_header
      %s20 = sphi 0, %s24
      %p21 = scmp.ge.s32.totalorder %s20, 4
      %s30 = sphi 0, %s32
      %s33 = sphi 0, %s30
      %s34 = sphi 0, %s33
      %s50 = sphi 0, %s34
      %s56 = sphi 0, %s58
      %s59 = sphi 0, %s56
      %s60 = sphi 0, %s59
      %s76 = sphi 0, %s60
      %s82 = sphi 0, %s84
      %s85 = sphi 0, %s82
      %s86 = sphi 0, %s85
      %s102 = sphi 0, %s86
      %s106 = sphi 0, %s106
      %s108 = sphi 0, %s106
      %s109 = sphi 0, %s108
      %s123 = sphi 0, %s109
      %s127 = sphi 0, %s127
      %s129 = sphi 0, %s127
      %s130 = sphi 0, %s129
      %s144 = sphi 0, %s130
      %s148 = sphi 0, %s148
      %s150 = sphi 0, %s148
      %s151 = sphi 0, %s150
      %s165 = sphi 0, %s151
      %s171 = sphi 0, %s173
      %s174 = sphi 0, %s171
      %s175 = sphi 0, %s174
      %s191 = sphi 0, %s175
      %s197 = sphi 0, %s199
      %s200 = sphi 0, %s197
      %s201 = sphi 0, %s200
      %s217 = sphi 0, %s201
    $region4: #{tpu_custom_call.1} parent=1 // loop_header_branch
      %23 = sbr.rel (%p21) target = $region8
    $region5: #{tpu_custom_call.1} parent=1 // loop_body
      %s25 = ssub.s32 %s20, 1
      %s26 = ssub.s32 %s20, 2
      %s27 = sadd.s32 %s20, 1
      %s28 = ssub.s32 %s20, %s27
      %p29 = scmp.eq.s32.totalorder %s28, 0
      %s31 = sadd.s32 %s30, 1
      %s32 = scalar_select %p29, %s30, %s31
      %p35 = pneg %p29
      %p36 = scmp.eq.s32.totalorder %s20, 1
      %p37 = por %p35, %p36
      %p38 = scmp.ne.s32.totalorder %s30, %s33
      %p39 = scmp.eq.s32.totalorder %s20, 0
      %p40 = por %p38, %p39
      %p41 = scmp.ne.s32.totalorder %s30, %s33
      %p42 = scmp.eq.s32.totalorder %s25, 1
      %p43 = por %p41, %p42
      %p44 = scmp.ne.s32.totalorder %s33, %s34
      %p45 = scmp.eq.s32.totalorder %s25, 0
      %p46 = por %p44, %p45
      %p47 = scmp.ne.s32.totalorder %s33, %s34
      %p48 = scmp.eq.s32.totalorder %s26, 1
      %p49 = por %p47, %p48
      %p51 = scmp.ne.s32.totalorder %s34, %s50
      %p52 = scmp.eq.s32.totalorder %s26, 0
      %p53 = por %p51, %p52
      %s54 = ssub.s32 %s20, %s27
      %p55 = scmp.eq.s32.totalorder %s54, 0
      %s57 = sadd.s32 %s56, 1
      %s58 = scalar_select %p55, %s56, %s57
      %p61 = pneg %p55
      %p62 = scmp.eq.s32.totalorder %s20, 1
      %p63 = por %p61, %p62
      %p64 = scmp.ne.s32.totalorder %s56, %s59
      %p65 = scmp.eq.s32.totalorder %s20, 0
      %p66 = por %p64, %p65
      %p67 = scmp.ne.s32.totalorder %s56, %s59
      %p68 = scmp.eq.s32.totalorder %s25, 1
      %p69 = por %p67, %p68
      %p70 = scmp.ne.s32.totalorder %s59, %s60
      %p71 = scmp.eq.s32.totalorder %s25, 0
      %p72 = por %p70, %p71
      %p73 = scmp.ne.s32.totalorder %s59, %s60
      %p74 = scmp.eq.s32.totalorder %s26, 1
      %p75 = por %p73, %p74
      %p77 = scmp.ne.s32.totalorder %s60, %s76
      %p78 = scmp.eq.s32.totalorder %s26, 0
      %p79 = por %p77, %p78
      %s80 = ssub.s32 %s20, %s27
      %p81 = scmp.eq.s32.totalorder %s80, 0
      %s83 = sadd.s32 %s82, 1
      %s84 = scalar_select %p81, %s82, %s83
      %p87 = pneg %p81
      %p88 = scmp.eq.s32.totalorder %s20, 1
      %p89 = por %p87, %p88
      %p90 = scmp.ne.s32.totalorder %s82, %s85
      %p91 = scmp.eq.s32.totalorder %s20, 0
      %p92 = por %p90, %p91
      %p93 = scmp.ne.s32.totalorder %s82, %s85
      %p94 = scmp.eq.s32.totalorder %s25, 1
      %p95 = por %p93, %p94
      %p96 = scmp.ne.s32.totalorder %s85, %s86
      %p97 = scmp.eq.s32.totalorder %s25, 0
      %p98 = por %p96, %p97
      %p99 = scmp.ne.s32.totalorder %s85, %s86
      %p100 = scmp.eq.s32.totalorder %s26, 1
      %p101 = por %p99, %p100
      %p103 = scmp.ne.s32.totalorder %s86, %s102
      %p104 = scmp.eq.s32.totalorder %s26, 0
      %p105 = por %p103, %p104
      %s107 = sadd.s32 %s106, 1
      %p110 = scmp.eq.s32.totalorder %s20, 1
      %p111 = scmp.ne.s32.totalorder %s106, %s108
      %p112 = scmp.eq.s32.totalorder %s20, 0
      %p113 = por %p111, %p112
      %p114 = scmp.ne.s32.totalorder %s106, %s108
      %p115 = scmp.eq.s32.totalorder %s25, 1
      %p116 = por %p114, %p115
      %p117 = scmp.ne.s32.totalorder %s108, %s109
      %p118 = scmp.eq.s32.totalorder %s25, 0
      %p119 = por %p117, %p118
      %p120 = scmp.ne.s32.totalorder %s108, %s109
      %p121 = scmp.eq.s32.totalorder %s26, 1
      %p122 = por %p120, %p121
      %p124 = scmp.ne.s32.totalorder %s109, %s123
      %p125 = scmp.eq.s32.totalorder %s26, 0
      %p126 = por %p124, %p125
      %s128 = sadd.s32 %s127, 1
      %p131 = scmp.eq.s32.totalorder %s20, 1
      %p132 = scmp.ne.s32.totalorder %s127, %s129
      %p133 = scmp.eq.s32.totalorder %s20, 0
      %p134 = por %p132, %p133
      %p135 = scmp.ne.s32.totalorder %s127, %s129
      %p136 = scmp.eq.s32.totalorder %s25, 1
      %p137 = por %p135, %p136
      %p138 = scmp.ne.s32.totalorder %s129, %s130
      %p139 = scmp.eq.s32.totalorder %s25, 0
      %p140 = por %p138, %p139
      %p141 = scmp.ne.s32.totalorder %s129, %s130
      %p142 = scmp.eq.s32.totalorder %s26, 1
      %p143 = por %p141, %p142
      %p145 = scmp.ne.s32.totalorder %s130, %s144
      %p146 = scmp.eq.s32.totalorder %s26, 0
      %p147 = por %p145, %p146
      %s149 = sadd.s32 %s148, 1
      %p152 = scmp.eq.s32.totalorder %s20, 1
      %p153 = scmp.ne.s32.totalorder %s148, %s150
      %p154 = scmp.eq.s32.totalorder %s20, 0
      %p155 = por %p153, %p154
      %p156 = scmp.ne.s32.totalorder %s148, %s150
      %p157 = scmp.eq.s32.totalorder %s25, 1
      %p158 = por %p156, %p157
      %p159 = scmp.ne.s32.totalorder %s150, %s151
      %p160 = scmp.eq.s32.totalorder %s25, 0
      %p161 = por %p159, %p160
      %p162 = scmp.ne.s32.totalorder %s150, %s151
      %p163 = scmp.eq.s32.totalorder %s26, 1
      %p164 = por %p162, %p163
      %p166 = scmp.ne.s32.totalorder %s151, %s165
      %p167 = scmp.eq.s32.totalorder %s26, 0
      %p168 = por %p166, %p167
      %s169 = ssub.s32 %s20, %s27
      %p170 = scmp.eq.s32.totalorder %s169, 0
      %s172 = sadd.s32 %s171, 1
      %s173 = scalar_select %p170, %s171, %s172
      %p176 = pneg %p170
      %p177 = scmp.eq.s32.totalorder %s20, 1
      %p178 = por %p176, %p177
      %p179 = scmp.ne.s32.totalorder %s171, %s174
      %p180 = scmp.eq.s32.totalorder %s20, 0
      %p181 = por %p179, %p180
      %p182 = scmp.ne.s32.totalorder %s171, %s174
      %p183 = scmp.eq.s32.totalorder %s25, 1
      %p184 = por %p182, %p183
      %p185 = scmp.ne.s32.totalorder %s174, %s175
      %p186 = scmp.eq.s32.totalorder %s25, 0
      %p187 = por %p185, %p186
      %p188 = scmp.ne.s32.totalorder %s174, %s175
      %p189 = scmp.eq.s32.totalorder %s26, 1
      %p190 = por %p188, %p189
      %p192 = scmp.ne.s32.totalorder %s175, %s191
      %p193 = scmp.eq.s32.totalorder %s26, 0
      %p194 = por %p192, %p193
      %s195 = ssub.s32 %s20, %s27
      %p196 = scmp.eq.s32.totalorder %s195, 0
      %s198 = sadd.s32 %s197, 1
      %s199 = scalar_select %p196, %s197, %s198
      %p202 = pneg %p196
      %p203 = scmp.eq.s32.totalorder %s20, 1
      %p204 = por %p202, %p203
      %p205 = scmp.ne.s32.totalorder %s197, %s200
      %p206 = scmp.eq.s32.totalorder %s20, 0
      %p207 = por %p205, %p206
      %p208 = scmp.ne.s32.totalorder %s197, %s200
      %p209 = scmp.eq.s32.totalorder %s25, 1
      %p210 = por %p208, %p209
      %p211 = scmp.ne.s32.totalorder %s200, %s201
      %p212 = scmp.eq.s32.totalorder %s25, 0
      %p213 = por %p211, %p212
      %p214 = scmp.ne.s32.totalorder %s200, %s201
      %p215 = scmp.eq.s32.totalorder %s26, 1
      %p216 = por %p214, %p215
      %p218 = scmp.ne.s32.totalorder %s201, %s217
      %p219 = scmp.eq.s32.totalorder %s26, 0
      %p220 = por %p218, %p219
      %p221 = scmp.le.s32.totalorder 1, %s20
      %p222 = scmp.lt.s32.totalorder %s20, 3
      %p223 = pnand %p221, %p222
      %p224 = pneg %p223
      // Predicated region
      $region9: #{tpu_custom_call.1} parent=5 // pred_check
        _
      $region10: #{tpu_custom_call.1} parent=5 // pred_check_branch
        %226 = sbr.rel (%p223) target = $region12
      $region11: #{tpu_custom_call.1} parent=5 // pred_region
        %s227 = ssub.s32 %s20, 1
        // Predicated region
        $region13: #{tpu_custom_call.1} parent=11 // pred_check
          %p228 = pneg %p119
        $region14: #{tpu_custom_call.1} parent=11 // pred_check_branch
          %230 = sbr.rel (%p228) target = $region16
        $region15: #{tpu_custom_call.1} parent=11 // pred_region
          _
        $region16: #{tpu_custom_call.1} parent=11 // pred_fallthru
          _
        // Predicated region
        $region17: #{tpu_custom_call.1} parent=11 // pred_check
          %p231 = pneg %p140
        $region18: #{tpu_custom_call.1} parent=11 // pred_check_branch
          %233 = sbr.rel (%p231) target = $region20
        $region19: #{tpu_custom_call.1} parent=11 // pred_region
          %235 = vsyncadd [#allocation6], 0
          %s236 = sshll.u32 %s4, 4
          %s237 = int_to_ptr.hbm [resolvable:$true] %s236
          %s238 = sshll.u32 [#allocation5], 4
          %s239 = int_to_ptr.vmem [resolvable:$true] %s238
          %244 = dma.hbm_to_vmem [thread:$0]  %s237, 1536, %s239, [#allocation6], 256, 256, 16
        $region20: #{tpu_custom_call.1} parent=11 // pred_fallthru
          _
        // Predicated region
        $region21: #{tpu_custom_call.1} parent=11 // pred_check
          %p245 = pneg %p161
        $region22: #{tpu_custom_call.1} parent=11 // pred_check_branch
          %247 = sbr.rel (%p245) target = $region24
        $region23: #{tpu_custom_call.1} parent=11 // pred_region
          _
        $region24: #{tpu_custom_call.1} parent=11 // pred_fallthru
          _
      $region12: #{tpu_custom_call.1} parent=5 // pred_fallthru
        _
      %p248 = scmp.lt.s32.totalorder %s20, 2
      // Predicated region
      $region25: #{tpu_custom_call.1} parent=5 // pred_check
        %p249 = pneg %p248
      $region26: #{tpu_custom_call.1} parent=5 // pred_check_branch
        %251 = sbr.rel (%p249) target = $region28
      $region27: #{tpu_custom_call.1} parent=5 // pred_region
        // Predicated region
        $region29: #{tpu_custom_call.1} parent=27 // pred_check
          %p252 = pneg %p40
        $region30: #{tpu_custom_call.1} parent=27 // pred_check_branch
          %254 = sbr.rel (%p252) target = $region32
        $region31: #{tpu_custom_call.1} parent=27 // pred_region
          %p255 = scmp.lt.s32.totalorder %s20, 1
          %s256 = scalar_select %p255, %s20, 1
          %s257 = smul.addr %s256, 8
          %s258 = smul.addr %s257, 4
          %s259 = scalar_lea.vmem %s0, %s258
        $region32: #{tpu_custom_call.1} parent=27 // pred_fallthru
          _
        // Predicated region
        $region33: #{tpu_custom_call.1} parent=27 // pred_check
          %p260 = pneg %p66
        $region34: #{tpu_custom_call.1} parent=27 // pred_check_branch
          %262 = sbr.rel (%p260) target = $region36
        $region35: #{tpu_custom_call.1} parent=27 // pred_region
          %p263 = scmp.lt.s32.totalorder %s20, 1
          %s264 = scalar_select %p263, %s20, 1
          %s265 = smul.addr %s264, 8
          %s266 = scalar_lea.vmem %s1, %s265
        $region36: #{tpu_custom_call.1} parent=27 // pred_fallthru
          _
        // Predicated region
        $region37: #{tpu_custom_call.1} parent=27 // pred_check
          %p267 = pneg %p92
        $region38: #{tpu_custom_call.1} parent=27 // pred_check_branch
          %269 = sbr.rel (%p267) target = $region40
        $region39: #{tpu_custom_call.1} parent=27 // pred_region
          %s270 = sand.u32 %s20, 1
          %s271 = scalar_lea.sflag [#allocation3], %s270
          %s272 = sand.u32 %s82, 1
          %s273 = smul.addr %s272, 8
          %s274 = scalar_lea.vmem [#allocation2], %s273
          %276 = vsyncadd %s271, 0
          %s277 = smul.addr %s20, 8
          %s278 = scalar_lea.hbm %s2, %s277
          %s280 = sshll.u32 %s278, 4
          %s281 = int_to_ptr.hbm [resolvable:$true] %s280
          %s282 = sshll.u32 %s274, 4
          %s283 = int_to_ptr.vmem [resolvable:$true] %s282
          %285 = dma.hbm_to_vmem [thread:$0]  %s281, 128, %s283, %s271
        $region40: #{tpu_custom_call.1} parent=27 // pred_fallthru
          _
        // Predicated region
        $region41: #{tpu_custom_call.1} parent=27 // pred_check
          %p286 = pneg %p181
        $region42: #{tpu_custom_call.1} parent=27 // pred_check_branch
          %288 = sbr.rel (%p286) target = $region44
        $region43: #{tpu_custom_call.1} parent=27 // pred_region
          %s289 = sand.u32 %s20, 1
          %s290 = scalar_lea.sflag [#allocation3], %s289
          %s291 = sand.u32 %s171, 1
          %s292 = smul.addr %s291, 8
          %s293 = scalar_lea.vmem [#allocation7], %s292
          %295 = vsyncadd %s290, 0
          %s296 = smul.addr %s20, 8
          %s297 = scalar_lea.hbm %s6, %s296
          %s299 = sshll.u32 %s297, 4
          %s300 = int_to_ptr.hbm [resolvable:$true] %s299
          %s301 = sshll.u32 %s293, 4
          %s302 = int_to_ptr.vmem [resolvable:$true] %s301
          %304 = dma.hbm_to_vmem [thread:$0]  %s300, 128, %s302, %s290
        $region44: #{tpu_custom_call.1} parent=27 // pred_fallthru
          _
      $region28: #{tpu_custom_call.1} parent=5 // pred_fallthru
        _
      %p305 = scmp.le.s32.totalorder 1, %s20
      %p306 = scmp.lt.s32.totalorder %s20, 3
      %p307 = pnand %p305, %p306
      %p308 = pneg %p307
      // Predicated region
      $region45: #{tpu_custom_call.1} parent=5 // pred_check
        _
      $region46: #{tpu_custom_call.1} parent=5 // pred_check_branch
        %310 = sbr.rel (%p307) target = $region48
      $region47: #{tpu_custom_call.1} parent=5 // pred_region
        %s311 = ssub.s32 %s20, 1
        %s312 = sand.u32 %s25, 1
        %s313 = scalar_lea.sflag [#allocation3], %s312
        %s314 = sand.u32 %s85, 1
        %s315 = smul.addr %s314, 8
        %s316 = scalar_lea.vmem [#allocation2], %s315
        // Predicated region
        $region49: #{tpu_custom_call.1} parent=47 // pred_check
          %p317 = pneg %p98
        $region50: #{tpu_custom_call.1} parent=47 // pred_check_branch
          %319 = sbr.rel (%p317) target = $region52
        $region51: #{tpu_custom_call.1} parent=47 // pred_region
          %321 = dma.done %s313, 128
        $region52: #{tpu_custom_call.1} parent=47 // pred_fallthru
          _
        // Predicated region
        $region53: #{tpu_custom_call.1} parent=47 // pred_check
          %p322 = pneg %p140
        $region54: #{tpu_custom_call.1} parent=47 // pred_check_branch
          %324 = sbr.rel (%p322) target = $region56
        $region55: #{tpu_custom_call.1} parent=47 // pred_region
          %326 = dma.done [#allocation6], 1536
        $region56: #{tpu_custom_call.1} parent=47 // pred_fallthru
          _
        %s327 = sand.u32 %s25, 1
        %s328 = scalar_lea.sflag [#allocation3], %s327
        %s329 = sand.u32 %s174, 1
        %s330 = smul.addr %s329, 8
        %s331 = scalar_lea.vmem [#allocation7], %s330
        // Predicated region
        $region57: #{tpu_custom_call.1} parent=47 // pred_check
          %p332 = pneg %p187
        $region58: #{tpu_custom_call.1} parent=47 // pred_check_branch
          %334 = sbr.rel (%p332) target = $region60
        $region59: #{tpu_custom_call.1} parent=47 // pred_region
          %336 = dma.done %s328, 128
        $region60: #{tpu_custom_call.1} parent=47 // pred_fallthru
          _
        %p337 = scmp.lt.s32.totalorder %s25, 1
        %s338 = scalar_select %p337, %s25, 1
        %s339 = smul.addr %s338, 8
        %s340 = smul.addr %s339, 4
        %s341 = scalar_lea.vmem %s0, %s340
        %p342 = pneg %p46
        %p343 = pneg %p43
        %p344 = scmp.lt.s32.totalorder %s25, 1
        %s345 = scalar_select %p344, %s25, 1
        %s346 = smul.addr %s345, 8
        %s347 = scalar_lea.vmem %s1, %s346
        %p348 = pneg %p72
        %p349 = pneg %p69
        %s350 = sand.u32 %s25, 1
        %s351 = scalar_lea.sflag [#allocation3], %s350
        %s352 = sand.u32 %s85, 1
        %s353 = smul.addr %s352, 8
        %s354 = scalar_lea.vmem [#allocation2], %s353
        %p355 = pneg %p98
        %p356 = pneg %p95
        %p357 = pneg %p119
        %p358 = pneg %p116
        %p359 = pneg %p140
        %p360 = pneg %p137
        %p361 = pneg %p161
        %p362 = pneg %p158
        %s363 = sand.u32 %s25, 1
        %s364 = scalar_lea.sflag [#allocation3], %s363
        %s365 = sand.u32 %s174, 1
        %s366 = smul.addr %s365, 8
        %s367 = scalar_lea.vmem [#allocation7], %s366
        %p368 = pneg %p187
        %p369 = pneg %p184
        %p370 = pneg %p213
        %p371 = pneg %p210
        %s372 = sand.u32 %s200, 1
        %s373 = scalar_lea.sflag [#allocation4], %s372
        %s374 = sand.u32 %s200, 1
        %s375 = smul.addr %s374, 24
        %s376 = scalar_lea.vmem [#allocation8], %s375
        %p377 = scmp.lt.s32.totalorder %s25, 1
        %s378 = scalar_select %p377, %s25, 1
        %s379 = smul.addr %s378, 8
        %s380 = smul.addr %s379, 4
        %s381 = scalar_lea.vmem %s0, %s380
        %p382 = scmp.lt.s32.totalorder %s25, 1
        %s383 = scalar_select %p382, %s25, 1
        %s384 = smul.addr %s383, 8
        %s385 = scalar_lea.vmem %s1, %s384
        %v387 = vld [vmem:[%s381] sm:$0xf]
        %v388 = vld [vmem:[%s381 + $0x4] sm:$0xf]
        %v389 = vld [vmem:[%s381 + $0x8] sm:$0xf]
        %v390 = vld [vmem:[%s381 + $0xc] sm:$0xf]
        %v391 = vld [vmem:[%s381 + $0x10] sm:$0xf]
        %v392 = vld [vmem:[%s381 + $0x14] sm:$0xf]
        %v393 = vld [vmem:[%s381 + $0x18] sm:$0xf]
        %v394 = vld [vmem:[%s381 + $0x1c] sm:$0xf]
        %v395 = vld [vmem:[%s3] sm:$0xff]
        %v396 = vld [vmem:[%s3 + $0x8] sm:$0xff]
        %v397 = vld [vmem:[%s3 + $0x10] sm:$0x11]
        %v398 = vld [vmem:[%s3 + $0x18] sm:$0x11]
        %v407 = vunpack.c.l.b16 %v387
        %v408 = vunpack.c.l.b16 %v388
        %v409 = vunpack.c.l.b16 %v389
        %v410 = vunpack.c.l.b16 %v390
        %v411 = vunpack.c.l.b16 %v391
        %v412 = vunpack.c.l.b16 %v392
        %v413 = vunpack.c.l.b16 %v393
        %v414 = vunpack.c.l.b16 %v394
        %v415 = vpack.c.b16 %v408, %v407
        %v416 = vpack.c.b16 %v410, %v409
        %v417 = vpack.c.b16 %v412, %v411
        %v418 = vpack.c.b16 %v414, %v413
        %v423 = vunpack.c.l.b16 %v395
        %v424 = vunpack.c.h.b16 %v395
        %v425 = vunpack.c.l.b16 %v396
        %v426 = vunpack.c.h.b16 %v396
        %v427 = vunpack.c.l.b16 %v397
        %v428 = vunpack.c.h.b16 %v397
        %v429 = vunpack.c.l.b16 %v398
        %v430 = vunpack.c.h.b16 %v398
        %v431 = vpack.c.b16 %v427, %v423
        %v432 = vpack.c.b16 %v428, %v424
        %v433 = vpack.c.b16 %v429, %v425
        %v434 = vpack.c.b16 %v430, %v426
        %vm435 = vcmask 80896
        %v437 = vsel %vm435, %v415, 0
        %v440 = vsel %vm435, %v416, 0
        %v443 = vsel %vm435, %v417, 0
        %v446 = vsel %vm435, %v418, 0
        %vm448 = vcmask 1044480
        %v450 = vsel %vm448, %v431, 0
        %v453 = vsel %vm448, %v432, 0
        %v456 = vsel %vm448, %v433, 0
        %v459 = vsel %vm448, %v434, 0
        %461 = vmatpush.bf16.msra.mxu0 0
        %462 = vmatpush.bf16.msra.mxu0 0
        %463 = vmatpush.bf16.msra.mxu0 0
        %464 = vmatpush.bf16.msra.mxu0 0
        %465 = vmatpush.bf16.msra.mxu0 0
        %466 = vmatpush.bf16.msra.mxu0 0
        %467 = vmatpush.bf16.msra.mxu0 0
        %468 = vmatpush.bf16.msra.mxu0 %v450
        %469 = vmatmul.bf16.gmra.mxu0 %v437
        %v470 = vpop.f32.mrf.mxu0
        %v471 = vadd.f32 0.0, %v470
        %v472 = vpop.f32.mrf.mxu0
        %v473 = vadd.f32 0.0, %v472
        %474 = vmatmul.bf16.gmra.mxu0 %v440
        %v475 = vpop.f32.mrf.mxu0
        %v476 = vadd.f32 0.0, %v475
        %v477 = vpop.f32.mrf.mxu0
        %v478 = vadd.f32 0.0, %v477
        %479 = vmatmul.bf16.gmra.mxu0 %v443
        %v480 = vpop.f32.mrf.mxu0
        %v481 = vadd.f32 0.0, %v480
        %v482 = vpop.f32.mrf.mxu0
        %v483 = vadd.f32 0.0, %v482
        %484 = vmatmul.bf16.gmra.mxu0 %v446
        %v485 = vpop.f32.mrf.mxu0
        %v486 = vadd.f32 0.0, %v485
        %v487 = vpop.f32.mrf.mxu0
        %v488 = vadd.f32 0.0, %v487
        %489 = vdwg.mxu0
        %490 = vmatpush.bf16.msra.mxu0 0
        %491 = vmatpush.bf16.msra.mxu0 0
        %492 = vmatpush.bf16.msra.mxu0 0
        %493 = vmatpush.bf16.msra.mxu0 0
        %494 = vmatpush.bf16.msra.mxu0 0
        %495 = vmatpush.bf16.msra.mxu0 0
        %496 = vmatpush.bf16.msra.mxu0 0
        %497 = vmatpush.bf16.msra.mxu0 %v453
        %498 = vmatmul.bf16.gmra.mxu0 %v437
        %v499 = vpop.f32.mrf.mxu0
        %v500 = vadd.f32 0.0, %v499
        %v501 = vpop.f32.mrf.mxu0
        %v502 = vadd.f32 0.0, %v501
        %503 = vmatmul.bf16.gmra.mxu0 %v440
        %v504 = vpop.f32.mrf.mxu0
        %v505 = vadd.f32 0.0, %v504
        %v506 = vpop.f32.mrf.mxu0
        %v507 = vadd.f32 0.0, %v506
        %508 = vmatmul.bf16.gmra.mxu0 %v443
        %v509 = vpop.f32.mrf.mxu0
        %v510 = vadd.f32 0.0, %v509
        %v511 = vpop.f32.mrf.mxu0
        %v512 = vadd.f32 0.0, %v511
        %513 = vmatmul.bf16.gmra.mxu0 %v446
        %v514 = vpop.f32.mrf.mxu0
        %v515 = vadd.f32 0.0, %v514
        %v516 = vpop.f32.mrf.mxu0
        %v517 = vadd.f32 0.0, %v516
        %518 = vdwg.mxu0
        %519 = vmatpush.bf16.msra.mxu0 0
        %520 = vmatpush.bf16.msra.mxu0 0
        %521 = vmatpush.bf16.msra.mxu0 0
        %522 = vmatpush.bf16.msra.mxu0 0
        %523 = vmatpush.bf16.msra.mxu0 0
        %524 = vmatpush.bf16.msra.mxu0 0
        %525 = vmatpush.bf16.msra.mxu0 0
        %526 = vmatpush.bf16.msra.mxu0 %v456
        %527 = vmatmul.bf16.gmra.mxu0 %v437
        %v528 = vpop.f32.mrf.mxu0
        %v529 = vadd.f32 0.0, %v528
        %v530 = vpop.f32.mrf.mxu0
        %v531 = vadd.f32 0.0, %v530
        %532 = vmatmul.bf16.gmra.mxu0 %v440
        %v533 = vpop.f32.mrf.mxu0
        %v534 = vadd.f32 0.0, %v533
        %v535 = vpop.f32.mrf.mxu0
        %v536 = vadd.f32 0.0, %v535
        %537 = vmatmul.bf16.gmra.mxu0 %v443
        %v538 = vpop.f32.mrf.mxu0
        %v539 = vadd.f32 0.0, %v538
        %v540 = vpop.f32.mrf.mxu0
        %v541 = vadd.f32 0.0, %v540
        %542 = vmatmul.bf16.gmra.mxu0 %v446
        %v543 = vpop.f32.mrf.mxu0
        %v544 = vadd.f32 0.0, %v543
        %v545 = vpop.f32.mrf.mxu0
        %v546 = vadd.f32 0.0, %v545
        %547 = vdwg.mxu0
        %548 = vmatpush.bf16.msra.mxu0 0
        %549 = vmatpush.bf16.msra.mxu0 0
        %550 = vmatpush.bf16.msra.mxu0 0
        %551 = vmatpush.bf16.msra.mxu0 0
        %552 = vmatpush.bf16.msra.mxu0 0
        %553 = vmatpush.bf16.msra.mxu0 0
        %554 = vmatpush.bf16.msra.mxu0 0
        %555 = vmatpush.bf16.msra.mxu0 %v459
        %556 = vmatmul.bf16.gmra.mxu0 %v437
        %v557 = vpop.f32.mrf.mxu0
        %v558 = vadd.f32 0.0, %v557
        %v559 = vpop.f32.mrf.mxu0
        %v560 = vadd.f32 0.0, %v559
        %561 = vmatmul.bf16.gmra.mxu0 %v440
        %v562 = vpop.f32.mrf.mxu0
        %v563 = vadd.f32 0.0, %v562
        %v564 = vpop.f32.mrf.mxu0
        %v565 = vadd.f32 0.0, %v564
        %566 = vmatmul.bf16.gmra.mxu0 %v443
        %v567 = vpop.f32.mrf.mxu0
        %v568 = vadd.f32 0.0, %v567
        %v569 = vpop.f32.mrf.mxu0
        %v570 = vadd.f32 0.0, %v569
        %571 = vmatmul.bf16.gmra.mxu0 %v446
        %v572 = vpop.f32.mrf.mxu0
        %v573 = vadd.f32 0.0, %v572
        %v574 = vpop.f32.mrf.mxu0
        %v575 = vadd.f32 0.0, %v574
        %576 = vdwg.mxu0
        %v577 = vld [vmem:[#allocation5] sm:$0xff]
        %v578 = vld [vmem:[#allocation5 + $0x8] sm:$0xff]
        %v579 = vld [vmem:[#allocation5 + $0x10] sm:$0xff]
        %v580 = vld [vmem:[#allocation5 + $0x18] sm:$0xff]
        %v581 = vld [vmem:[#allocation5 + $0x20] sm:$0xff]
        %v582 = vld [vmem:[#allocation5 + $0x28] sm:$0xff]
        %v583 = vld [vmem:[#allocation5 + $0x30] sm:$0xff]
        %v584 = vld [vmem:[#allocation5 + $0x38] sm:$0xff]
        %v585 = vld [vmem:[#allocation5 + $0x40] sm:$0xff]
        %v586 = vld [vmem:[#allocation5 + $0x48] sm:$0xff]
        %v587 = vld [vmem:[#allocation5 + $0x50] sm:$0xff]
        %v588 = vld [vmem:[#allocation5 + $0x58] sm:$0xff]
        %v589 = vld [vmem:[%s385] sm:$0xff]
        %v590 = vld [vmem:[%s316] sm:$0xff]
        %v591 = vpack.c.bf16 %v589, %v589
        %v604 = vunpack.c.l.b16 %v577
        %v605 = vunpack.c.h.b16 %v577
        %v606 = vunpack.c.l.b16 %v578
        %v607 = vunpack.c.h.b16 %v578
        %v608 = vunpack.c.l.b16 %v579
        %v609 = vunpack.c.h.b16 %v579
        %v610 = vunpack.c.l.b16 %v580
        %v611 = vunpack.c.h.b16 %v580
        %v612 = vunpack.c.l.b16 %v581
        %v613 = vunpack.c.h.b16 %v581
        %v614 = vunpack.c.l.b16 %v582
        %v615 = vunpack.c.h.b16 %v582
        %v616 = vunpack.c.l.b16 %v583
        %v617 = vunpack.c.h.b16 %v583
        %v618 = vunpack.c.l.b16 %v584
        %v619 = vunpack.c.h.b16 %v584
        %v620 = vunpack.c.l.b16 %v585
        %v621 = vunpack.c.h.b16 %v585
        %v622 = vunpack.c.l.b16 %v586
        %v623 = vunpack.c.h.b16 %v586
        %v624 = vunpack.c.l.b16 %v587
        %v625 = vunpack.c.h.b16 %v587
        %v626 = vunpack.c.l.b16 %v588
        %v627 = vunpack.c.h.b16 %v588
        %v628 = vpack.c.b16 %v608, %v604
        %v629 = vpack.c.b16 %v609, %v605
        %v630 = vpack.c.b16 %v610, %v606
        %v631 = vpack.c.b16 %v611, %v607
        %v632 = vpack.c.b16 %v616, %v612
        %v633 = vpack.c.b16 %v617, %v613
        %v634 = vpack.c.b16 %v618, %v614
        %v635 = vpack.c.b16 %v619, %v615
        %v636 = vpack.c.b16 %v624, %v620
        %v637 = vpack.c.b16 %v625, %v621
        %v638 = vpack.c.b16 %v626, %v622
        %v639 = vpack.c.b16 %v627, %v623
        %vm652 = vcmask 392192
        %v654 = vsel %vm652, %v591, 0
        %656 = vmatpush.bf16.msra.mxu0 0
        %657 = vmatpush.bf16.msra.mxu0 0
        %658 = vmatpush.bf16.msra.mxu0 0
        %659 = vmatpush.bf16.msra.mxu0 0
        %660 = vmatpush.bf16.msra.mxu0 0
        %661 = vmatpush.bf16.msra.mxu0 %v636
        %662 = vmatpush.bf16.msra.mxu0 %v632
        %663 = vmatpush.bf16.msra.mxu0 %v628
        %664 = vmatmul.bf16.gmra.mxu0 %v654
        %v665 = vpop.f32.mrf.mxu0
        %v666 = vadd.f32 0.0, %v665
        %v667 = vpop.f32.mrf.mxu0
        %668 = vdwg.mxu0
        %669 = vmatpush.bf16.msra.mxu0 0
        %670 = vmatpush.bf16.msra.mxu0 0
        %671 = vmatpush.bf16.msra.mxu0 0
        %672 = vmatpush.bf16.msra.mxu0 0
        %673 = vmatpush.bf16.msra.mxu0 0
        %674 = vmatpush.bf16.msra.mxu0 %v637
        %675 = vmatpush.bf16.msra.mxu0 %v633
        %676 = vmatpush.bf16.msra.mxu0 %v629
        %677 = vmatmul.bf16.gmra.mxu0 %v654
        %v678 = vpop.f32.mrf.mxu0
        %v679 = vadd.f32 0.0, %v678
        %v680 = vpop.f32.mrf.mxu0
        %681 = vdwg.mxu0
        %682 = vmatpush.bf16.msra.mxu0 0
        %683 = vmatpush.bf16.msra.mxu0 0
        %684 = vmatpush.bf16.msra.mxu0 0
        %685 = vmatpush.bf16.msra.mxu0 0
        %686 = vmatpush.bf16.msra.mxu0 0
        %687 = vmatpush.bf16.msra.mxu0 %v638
        %688 = vmatpush.bf16.msra.mxu0 %v634
        %689 = vmatpush.bf16.msra.mxu0 %v630
        %690 = vmatmul.bf16.gmra.mxu0 %v654
        %v691 = vpop.f32.mrf.mxu0
        %v692 = vadd.f32 0.0, %v691
        %v693 = vpop.f32.mrf.mxu0
        %694 = vdwg.mxu0
        %695 = vmatpush.bf16.msra.mxu0 0
        %696 = vmatpush.bf16.msra.mxu0 0
        %697 = vmatpush.bf16.msra.mxu0 0
        %698 = vmatpush.bf16.msra.mxu0 0
        %699 = vmatpush.bf16.msra.mxu0 0
        %700 = vmatpush.bf16.msra.mxu0 %v639
        %701 = vmatpush.bf16.msra.mxu0 %v635
        %702 = vmatpush.bf16.msra.mxu0 %v631
        %703 = vmatmul.bf16.gmra.mxu0 %v654
        %v704 = vpop.f32.mrf.mxu0
        %v705 = vadd.f32 0.0, %v704
        %v706 = vpop.f32.mrf.mxu0
        %707 = vdwg.mxu0
        %v708 = vadd.f32 %v471, %v666
        %v709 = vadd.f32 %v500, %v679
        %v710 = vadd.f32 %v529, %v692
        %v711 = vadd.f32 %v558, %v705
        %v712 = vxor.u32 %v708, 2147483648
        %v713 = vmul.f32 %v712, 1.442695
        %v714 = vpow.pop %v713
        %v715 = vadd.f32 %v714, 1.0
        %v716 = vrcp.pop %v715
        %v717 = vmul.f32 %v715, %v716
        %v718 = vsub.f32 1.0, %v717
        %v719 = vmul.f32 %v716, %v718
        %v720 = vadd.f32 %v716, %v719
        %vm721 = vweird.f32 %v715
        %vm722 = vweird.f32 %v716
        %vm723 = vmor %vm721, %vm722
        %v724 = vsel %vm723, %v716, %v720
        %v725 = vand.u32 2147483647, %v715
        %vm726 = vcmp.eq.f32.partialorder %v725, 8.507059e+37
        %v727 = vand.u32 %v715, 2147483648
        %v728 = vor.u32 1.1754944e-38, %v727
        %v729 = vsel %vm726, %v728, %v724
        %v730 = vmul.f32 1.0, %v729
        %v731 = vxor.u32 %v709, 2147483648
        %v732 = vmul.f32 %v731, 1.442695
        %v733 = vpow.pop %v732
        %v734 = vadd.f32 %v733, 1.0
        %v735 = vrcp.pop %v734
        %v736 = vmul.f32 %v734, %v735
        %v737 = vsub.f32 1.0, %v736
        %v738 = vmul.f32 %v735, %v737
        %v739 = vadd.f32 %v735, %v738
        %vm740 = vweird.f32 %v734
        %vm741 = vweird.f32 %v735
        %vm742 = vmor %vm740, %vm741
        %v743 = vsel %vm742, %v735, %v739
        %v744 = vand.u32 2147483647, %v734
        %vm745 = vcmp.eq.f32.partialorder %v744, 8.507059e+37
        %v746 = vand.u32 %v734, 2147483648
        %v747 = vor.u32 1.1754944e-38, %v746
        %v748 = vsel %vm745, %v747, %v743
        %v749 = vmul.f32 1.0, %v748
        %v750 = vtanh.pop %v710
        %v751 = vxor.u32 %v711, 2147483648
        %v752 = vmul.f32 %v751, 1.442695
        %v753 = vpow.pop %v752
        %v754 = vadd.f32 %v753, 1.0
        %v755 = vrcp.pop %v754
        %v756 = vmul.f32 %v754, %v755
        %v757 = vsub.f32 1.0, %v756
        %v758 = vmul.f32 %v755, %v757
        %v759 = vadd.f32 %v755, %v758
        %vm760 = vweird.f32 %v754
        %vm761 = vweird.f32 %v755
        %vm762 = vmor %vm760, %vm761
        %v763 = vsel %vm762, %v755, %v759
        %v764 = vand.u32 2147483647, %v754
        %vm765 = vcmp.eq.f32.partialorder %v764, 8.507059e+37
        %v766 = vand.u32 %v754, 2147483648
        %v767 = vor.u32 1.1754944e-38, %v766
        %v768 = vsel %vm765, %v767, %v763
        %v769 = vmul.f32 1.0, %v768
        %v770 = vmul.f32 %v749, %v590
        %v771 = vmul.f32 %v730, %v750
        %v772 = vadd.f32 %v770, %v771
        %v773 = vtanh.pop %v772
        %v774 = vmul.f32 %v769, %v773
        %v775 = vpack.c.bf16 %v774, %v774
        %v777 = vsel %vm652, %v775, 0
        %779 = vmatpush.bf16.msra.mxu0 0
        %780 = vmatpush.bf16.msra.mxu0 0
        %781 = vmatpush.bf16.msra.mxu0 0
        %782 = vmatpush.bf16.msra.mxu0 0
        %783 = vmatpush.bf16.msra.mxu0 0
        %784 = vmatpush.bf16.msra.mxu0 %v636
        %785 = vmatpush.bf16.msra.mxu0 %v632
        %786 = vmatpush.bf16.msra.mxu0 %v628
        %787 = vmatmul.bf16.gmra.mxu0 %v777
        %v788 = vpop.f32.mrf.mxu0
        %v789 = vadd.f32 0.0, %v788
        %v790 = vpop.f32.mrf.mxu0
        %791 = vdwg.mxu0
        %792 = vmatpush.bf16.msra.mxu0 0
        %793 = vmatpush.bf16.msra.mxu0 0
        %794 = vmatpush.bf16.msra.mxu0 0
        %795 = vmatpush.bf16.msra.mxu0 0
        %796 = vmatpush.bf16.msra.mxu0 0
        %797 = vmatpush.bf16.msra.mxu0 %v637
        %798 = vmatpush.bf16.msra.mxu0 %v633
        %799 = vmatpush.bf16.msra.mxu0 %v629
        %800 = vmatmul.bf16.gmra.mxu0 %v777
        %v801 = vpop.f32.mrf.mxu0
        %v802 = vadd.f32 0.0, %v801
        %v803 = vpop.f32.mrf.mxu0
        %804 = vdwg.mxu0
        %805 = vmatpush.bf16.msra.mxu0 0
        %806 = vmatpush.bf16.msra.mxu0 0
        %807 = vmatpush.bf16.msra.mxu0 0
        %808 = vmatpush.bf16.msra.mxu0 0
        %809 = vmatpush.bf16.msra.mxu0 0
        %810 = vmatpush.bf16.msra.mxu0 %v638
        %811 = vmatpush.bf16.msra.mxu0 %v634
        %812 = vmatpush.bf16.msra.mxu0 %v630
        %813 = vmatmul.bf16.gmra.mxu0 %v777
        %v814 = vpop.f32.mrf.mxu0
        %v815 = vadd.f32 0.0, %v814
        %v816 = vpop.f32.mrf.mxu0
        %817 = vdwg.mxu0
        %818 = vmatpush.bf16.msra.mxu0 0
        %819 = vmatpush.bf16.msra.mxu0 0
        %820 = vmatpush.bf16.msra.mxu0 0
        %821 = vmatpush.bf16.msra.mxu0 0
        %822 = vmatpush.bf16.msra.mxu0 0
        %823 = vmatpush.bf16.msra.mxu0 %v639
        %824 = vmatpush.bf16.msra.mxu0 %v635
        %825 = vmatpush.bf16.msra.mxu0 %v631
        %826 = vmatmul.bf16.gmra.mxu0 %v777
        %v827 = vpop.f32.mrf.mxu0
        %v828 = vadd.f32 0.0, %v827
        %v829 = vpop.f32.mrf.mxu0
        %830 = vdwg.mxu0
        %v831 = vadd.f32 %v473, %v789
        %v832 = vadd.f32 %v502, %v802
        %v833 = vadd.f32 %v531, %v815
        %v834 = vadd.f32 %v560, %v828
        %v835 = vxor.u32 %v831, 2147483648
        %v836 = vmul.f32 %v835, 1.442695
        %v837 = vpow.pop %v836
        %v838 = vadd.f32 %v837, 1.0
        %v839 = vrcp.pop %v838
        %v840 = vmul.f32 %v838, %v839
        %v841 = vsub.f32 1.0, %v840
        %v842 = vmul.f32 %v839, %v841
        %v843 = vadd.f32 %v839, %v842
        %vm844 = vweird.f32 %v838
        %vm845 = vweird.f32 %v839
        %vm846 = vmor %vm844, %vm845
        %v847 = vsel %vm846, %v839, %v843
        %v848 = vand.u32 2147483647, %v838
        %vm849 = vcmp.eq.f32.partialorder %v848, 8.507059e+37
        %v850 = vand.u32 %v838, 2147483648
        %v851 = vor.u32 1.1754944e-38, %v850
        %v852 = vsel %vm849, %v851, %v847
        %v853 = vmul.f32 1.0, %v852
        %v854 = vxor.u32 %v832, 2147483648
        %v855 = vmul.f32 %v854, 1.442695
        %v856 = vpow.pop %v855
        %v857 = vadd.f32 %v856, 1.0
        %v858 = vrcp.pop %v857
        %v859 = vmul.f32 %v857, %v858
        %v860 = vsub.f32 1.0, %v859
        %v861 = vmul.f32 %v858, %v860
        %v862 = vadd.f32 %v858, %v861
        %vm863 = vweird.f32 %v857
        %vm864 = vweird.f32 %v858
        %vm865 = vmor %vm863, %vm864
        %v866 = vsel %vm865, %v858, %v862
        %v867 = vand.u32 2147483647, %v857
        %vm868 = vcmp.eq.f32.partialorder %v867, 8.507059e+37
        %v869 = vand.u32 %v857, 2147483648
        %v870 = vor.u32 1.1754944e-38, %v869
        %v871 = vsel %vm868, %v870, %v866
        %v872 = vmul.f32 1.0, %v871
        %v873 = vtanh.pop %v833
        %v874 = vxor.u32 %v834, 2147483648
        %v875 = vmul.f32 %v874, 1.442695
        %v876 = vpow.pop %v875
        %v877 = vadd.f32 %v876, 1.0
        %v878 = vrcp.pop %v877
        %v879 = vmul.f32 %v877, %v878
        %v880 = vsub.f32 1.0, %v879
        %v881 = vmul.f32 %v878, %v880
        %v882 = vadd.f32 %v878, %v881
        %vm883 = vweird.f32 %v877
        %vm884 = vweird.f32 %v878
        %vm885 = vmor %vm883, %vm884
        %v886 = vsel %vm885, %v878, %v882
        %v887 = vand.u32 2147483647, %v877
        %vm888 = vcmp.eq.f32.partialorder %v887, 8.507059e+37
        %v889 = vand.u32 %v877, 2147483648
        %v890 = vor.u32 1.1754944e-38, %v889
        %v891 = vsel %vm888, %v890, %v886
        %v892 = vmul.f32 1.0, %v891
        %v893 = vmul.f32 %v872, %v772
        %v894 = vmul.f32 %v853, %v873
        %v895 = vadd.f32 %v893, %v894
        %v896 = vtanh.pop %v895
        %v897 = vmul.f32 %v892, %v896
        %v898 = vpack.c.bf16 %v897, %v897
        %v900 = vsel %vm652, %v898, 0
        %902 = vmatpush.bf16.msra.mxu0 0
        %903 = vmatpush.bf16.msra.mxu0 0
        %904 = vmatpush.bf16.msra.mxu0 0
        %905 = vmatpush.bf16.msra.mxu0 0
        %906 = vmatpush.bf16.msra.mxu0 0
        %907 = vmatpush.bf16.msra.mxu0 %v636
        %908 = vmatpush.bf16.msra.mxu0 %v632
        %909 = vmatpush.bf16.msra.mxu0 %v628
        %910 = vmatmul.bf16.gmra.mxu0 %v900
        %v911 = vpop.f32.mrf.mxu0
        %v912 = vadd.f32 0.0, %v911
        %v913 = vpop.f32.mrf.mxu0
        %914 = vdwg.mxu0
        %915 = vmatpush.bf16.msra.mxu0 0
        %916 = vmatpush.bf16.msra.mxu0 0
        %917 = vmatpush.bf16.msra.mxu0 0
        %918 = vmatpush.bf16.msra.mxu0 0
        %919 = vmatpush.bf16.msra.mxu0 0
        %920 = vmatpush.bf16.msra.mxu0 %v637
        %921 = vmatpush.bf16.msra.mxu0 %v633
        %922 = vmatpush.bf16.msra.mxu0 %v629
        %923 = vmatmul.bf16.gmra.mxu0 %v900
        %v924 = vpop.f32.mrf.mxu0
        %v925 = vadd.f32 0.0, %v924
        %v926 = vpop.f32.mrf.mxu0
        %927 = vdwg.mxu0
        %928 = vmatpush.bf16.msra.mxu0 0
        %929 = vmatpush.bf16.msra.mxu0 0
        %930 = vmatpush.bf16.msra.mxu0 0
        %931 = vmatpush.bf16.msra.mxu0 0
        %932 = vmatpush.bf16.msra.mxu0 0
        %933 = vmatpush.bf16.msra.mxu0 %v638
        %934 = vmatpush.bf16.msra.mxu0 %v634
        %935 = vmatpush.bf16.msra.mxu0 %v630
        %936 = vmatmul.bf16.gmra.mxu0 %v900
        %v937 = vpop.f32.mrf.mxu0
        %v938 = vadd.f32 0.0, %v937
        %v939 = vpop.f32.mrf.mxu0
        %940 = vdwg.mxu0
        %941 = vmatpush.bf16.msra.mxu0 0
        %942 = vmatpush.bf16.msra.mxu0 0
        %943 = vmatpush.bf16.msra.mxu0 0
        %944 = vmatpush.bf16.msra.mxu0 0
        %945 = vmatpush.bf16.msra.mxu0 0
        %946 = vmatpush.bf16.msra.mxu0 %v639
        %947 = vmatpush.bf16.msra.mxu0 %v635
        %948 = vmatpush.bf16.msra.mxu0 %v631
        %949 = vmatmul.bf16.gmra.mxu0 %v900
        %v950 = vpop.f32.mrf.mxu0
        %v951 = vadd.f32 0.0, %v950
        %v952 = vpop.f32.mrf.mxu0
        %953 = vdwg.mxu0
        %v954 = vadd.f32 %v476, %v912
        %v955 = vadd.f32 %v505, %v925
        %v956 = vadd.f32 %v534, %v938
        %v957 = vadd.f32 %v563, %v951
        %v958 = vxor.u32 %v954, 2147483648
        %v959 = vmul.f32 %v958, 1.442695
        %v960 = vpow.pop %v959
        %v961 = vadd.f32 %v960, 1.0
        %v962 = vrcp.pop %v961
        %v963 = vmul.f32 %v961, %v962
        %v964 = vsub.f32 1.0, %v963
        %v965 = vmul.f32 %v962, %v964
        %v966 = vadd.f32 %v962, %v965
        %vm967 = vweird.f32 %v961
        %vm968 = vweird.f32 %v962
        %vm969 = vmor %vm967, %vm968
        %v970 = vsel %vm969, %v962, %v966
        %v971 = vand.u32 2147483647, %v961
        %vm972 = vcmp.eq.f32.partialorder %v971, 8.507059e+37
        %v973 = vand.u32 %v961, 2147483648
        %v974 = vor.u32 1.1754944e-38, %v973
        %v975 = vsel %vm972, %v974, %v970
        %v976 = vmul.f32 1.0, %v975
        %v977 = vxor.u32 %v955, 2147483648
        %v978 = vmul.f32 %v977, 1.442695
        %v979 = vpow.pop %v978
        %v980 = vadd.f32 %v979, 1.0
        %v981 = vrcp.pop %v980
        %v982 = vmul.f32 %v980, %v981
        %v983 = vsub.f32 1.0, %v982
        %v984 = vmul.f32 %v981, %v983
        %v985 = vadd.f32 %v981, %v984
        %vm986 = vweird.f32 %v980
        %vm987 = vweird.f32 %v981
        %vm988 = vmor %vm986, %vm987
        %v989 = vsel %vm988, %v981, %v985
        %v990 = vand.u32 2147483647, %v980
        %vm991 = vcmp.eq.f32.partialorder %v990, 8.507059e+37
        %v992 = vand.u32 %v980, 2147483648
        %v993 = vor.u32 1.1754944e-38, %v992
        %v994 = vsel %vm991, %v993, %v989
        %v995 = vmul.f32 1.0, %v994
        %v996 = vtanh.pop %v956
        %v997 = vxor.u32 %v957, 2147483648
        %v998 = vmul.f32 %v997, 1.442695
        %v999 = vpow.pop %v998
        %v1000 = vadd.f32 %v999, 1.0
        %v1001 = vrcp.pop %v1000
        %v1002 = vmul.f32 %v1000, %v1001
        %v1003 = vsub.f32 1.0, %v1002
        %v1004 = vmul.f32 %v1001, %v1003
        %v1005 = vadd.f32 %v1001, %v1004
        %vm1006 = vweird.f32 %v1000
        %vm1007 = vweird.f32 %v1001
        %vm1008 = vmor %vm1006, %vm1007
        %v1009 = vsel %vm1008, %v1001, %v1005
        %v1010 = vand.u32 2147483647, %v1000
        %vm1011 = vcmp.eq.f32.partialorder %v1010, 8.507059e+37
        %v1012 = vand.u32 %v1000, 2147483648
        %v1013 = vor.u32 1.1754944e-38, %v1012
        %v1014 = vsel %vm1011, %v1013, %v1009
        %v1015 = vmul.f32 1.0, %v1014
        %v1016 = vmul.f32 %v995, %v895
        %v1017 = vmul.f32 %v976, %v996
        %v1018 = vadd.f32 %v1016, %v1017
        %v1019 = vtanh.pop %v1018
        %v1020 = vmul.f32 %v1015, %v1019
        %v1021 = vpack.c.bf16 %v1020, %v1020
        %v1023 = vsel %vm652, %v1021, 0
        %1025 = vmatpush.bf16.msra.mxu0 0
        %1026 = vmatpush.bf16.msra.mxu0 0
        %1027 = vmatpush.bf16.msra.mxu0 0
        %1028 = vmatpush.bf16.msra.mxu0 0
        %1029 = vmatpush.bf16.msra.mxu0 0
        %1030 = vmatpush.bf16.msra.mxu0 %v636
        %1031 = vmatpush.bf16.msra.mxu0 %v632
        %1032 = vmatpush.bf16.msra.mxu0 %v628
        %1033 = vmatmul.bf16.gmra.mxu0 %v1023
        %v1034 = vpop.f32.mrf.mxu0
        %v1035 = vadd.f32 0.0, %v1034
        %v1036 = vpop.f32.mrf.mxu0
        %1037 = vdwg.mxu0
        %1038 = vmatpush.bf16.msra.mxu0 0
        %1039 = vmatpush.bf16.msra.mxu0 0
        %1040 = vmatpush.bf16.msra.mxu0 0
        %1041 = vmatpush.bf16.msra.mxu0 0
        %1042 = vmatpush.bf16.msra.mxu0 0
        %1043 = vmatpush.bf16.msra.mxu0 %v637
        %1044 = vmatpush.bf16.msra.mxu0 %v633
        %1045 = vmatpush.bf16.msra.mxu0 %v629
        %1046 = vmatmul.bf16.gmra.mxu0 %v1023
        %v1047 = vpop.f32.mrf.mxu0
        %v1048 = vadd.f32 0.0, %v1047
        %v1049 = vpop.f32.mrf.mxu0
        %1050 = vdwg.mxu0
        %1051 = vmatpush.bf16.msra.mxu0 0
        %1052 = vmatpush.bf16.msra.mxu0 0
        %1053 = vmatpush.bf16.msra.mxu0 0
        %1054 = vmatpush.bf16.msra.mxu0 0
        %1055 = vmatpush.bf16.msra.mxu0 0
        %1056 = vmatpush.bf16.msra.mxu0 %v638
        %1057 = vmatpush.bf16.msra.mxu0 %v634
        %1058 = vmatpush.bf16.msra.mxu0 %v630
        %1059 = vmatmul.bf16.gmra.mxu0 %v1023
        %v1060 = vpop.f32.mrf.mxu0
        %v1061 = vadd.f32 0.0, %v1060
        %v1062 = vpop.f32.mrf.mxu0
        %1063 = vdwg.mxu0
        %1064 = vmatpush.bf16.msra.mxu0 0
        %1065 = vmatpush.bf16.msra.mxu0 0
        %1066 = vmatpush.bf16.msra.mxu0 0
        %1067 = vmatpush.bf16.msra.mxu0 0
        %1068 = vmatpush.bf16.msra.mxu0 0
        %1069 = vmatpush.bf16.msra.mxu0 %v639
        %1070 = vmatpush.bf16.msra.mxu0 %v635
        %1071 = vmatpush.bf16.msra.mxu0 %v631
        %1072 = vmatmul.bf16.gmra.mxu0 %v1023
        %v1073 = vpop.f32.mrf.mxu0
        %v1074 = vadd.f32 0.0, %v1073
        %v1075 = vpop.f32.mrf.mxu0
        %1076 = vdwg.mxu0
        %v1077 = vadd.f32 %v478, %v1035
        %v1078 = vadd.f32 %v507, %v1048
        %v1079 = vadd.f32 %v536, %v1061
        %v1080 = vadd.f32 %v565, %v1074
        %v1081 = vxor.u32 %v1077, 2147483648
        %v1082 = vmul.f32 %v1081, 1.442695
        %v1083 = vpow.pop %v1082
        %v1084 = vadd.f32 %v1083, 1.0
        %v1085 = vrcp.pop %v1084
        %v1086 = vmul.f32 %v1084, %v1085
        %v1087 = vsub.f32 1.0, %v1086
        %v1088 = vmul.f32 %v1085, %v1087
        %v1089 = vadd.f32 %v1085, %v1088
        %vm1090 = vweird.f32 %v1084
        %vm1091 = vweird.f32 %v1085
        %vm1092 = vmor %vm1090, %vm1091
        %v1093 = vsel %vm1092, %v1085, %v1089
        %v1094 = vand.u32 2147483647, %v1084
        %vm1095 = vcmp.eq.f32.partialorder %v1094, 8.507059e+37
        %v1096 = vand.u32 %v1084, 2147483648
        %v1097 = vor.u32 1.1754944e-38, %v1096
        %v1098 = vsel %vm1095, %v1097, %v1093
        %v1099 = vmul.f32 1.0, %v1098
        %v1100 = vxor.u32 %v1078, 2147483648
        %v1101 = vmul.f32 %v1100, 1.442695
        %v1102 = vpow.pop %v1101
        %v1103 = vadd.f32 %v1102, 1.0
        %v1104 = vrcp.pop %v1103
        %v1105 = vmul.f32 %v1103, %v1104
        %v1106 = vsub.f32 1.0, %v1105
        %v1107 = vmul.f32 %v1104, %v1106
        %v1108 = vadd.f32 %v1104, %v1107
        %vm1109 = vweird.f32 %v1103
        %vm1110 = vweird.f32 %v1104
        %vm1111 = vmor %vm1109, %vm1110
        %v1112 = vsel %vm1111, %v1104, %v1108
        %v1113 = vand.u32 2147483647, %v1103
        %vm1114 = vcmp.eq.f32.partialorder %v1113, 8.507059e+37
        %v1115 = vand.u32 %v1103, 2147483648
        %v1116 = vor.u32 1.1754944e-38, %v1115
        %v1117 = vsel %vm1114, %v1116, %v1112
        %v1118 = vmul.f32 1.0, %v1117
        %v1119 = vtanh.pop %v1079
        %v1120 = vxor.u32 %v1080, 2147483648
        %v1121 = vmul.f32 %v1120, 1.442695
        %v1122 = vpow.pop %v1121
        %v1123 = vadd.f32 %v1122, 1.0
        %v1124 = vrcp.pop %v1123
        %v1125 = vmul.f32 %v1123, %v1124
        %v1126 = vsub.f32 1.0, %v1125
        %v1127 = vmul.f32 %v1124, %v1126
        %v1128 = vadd.f32 %v1124, %v1127
        %vm1129 = vweird.f32 %v1123
        %vm1130 = vweird.f32 %v1124
        %vm1131 = vmor %vm1129, %vm1130
        %v1132 = vsel %vm1131, %v1124, %v1128
        %v1133 = vand.u32 2147483647, %v1123
        %vm1134 = vcmp.eq.f32.partialorder %v1133, 8.507059e+37
        %v1135 = vand.u32 %v1123, 2147483648
        %v1136 = vor.u32 1.1754944e-38, %v1135
        %v1137 = vsel %vm1134, %v1136, %v1132
        %v1138 = vmul.f32 1.0, %v1137
        %v1139 = vmul.f32 %v1118, %v1018
        %v1140 = vmul.f32 %v1099, %v1119
        %v1141 = vadd.f32 %v1139, %v1140
        %v1142 = vtanh.pop %v1141
        %v1143 = vmul.f32 %v1138, %v1142
        %v1144 = vpack.c.bf16 %v1143, %v1143
        %v1146 = vsel %vm652, %v1144, 0
        %1148 = vmatpush.bf16.msra.mxu0 0
        %1149 = vmatpush.bf16.msra.mxu0 0
        %1150 = vmatpush.bf16.msra.mxu0 0
        %1151 = vmatpush.bf16.msra.mxu0 0
        %1152 = vmatpush.bf16.msra.mxu0 0
        %1153 = vmatpush.bf16.msra.mxu0 %v636
        %1154 = vmatpush.bf16.msra.mxu0 %v632
        %1155 = vmatpush.bf16.msra.mxu0 %v628
        %1156 = vmatmul.bf16.gmra.mxu0 %v1146
        %v1157 = vpop.f32.mrf.mxu0
        %v1158 = vadd.f32 0.0, %v1157
        %v1159 = vpop.f32.mrf.mxu0
        %1160 = vdwg.mxu0
        %1161 = vmatpush.bf16.msra.mxu0 0
        %1162 = vmatpush.bf16.msra.mxu0 0
        %1163 = vmatpush.bf16.msra.mxu0 0
        %1164 = vmatpush.bf16.msra.mxu0 0
        %1165 = vmatpush.bf16.msra.mxu0 0
        %1166 = vmatpush.bf16.msra.mxu0 %v637
        %1167 = vmatpush.bf16.msra.mxu0 %v633
        %1168 = vmatpush.bf16.msra.mxu0 %v629
        %1169 = vmatmul.bf16.gmra.mxu0 %v1146
        %v1170 = vpop.f32.mrf.mxu0
        %v1171 = vadd.f32 0.0, %v1170
        %v1172 = vpop.f32.mrf.mxu0
        %1173 = vdwg.mxu0
        %1174 = vmatpush.bf16.msra.mxu0 0
        %1175 = vmatpush.bf16.msra.mxu0 0
        %1176 = vmatpush.bf16.msra.mxu0 0
        %1177 = vmatpush.bf16.msra.mxu0 0
        %1178 = vmatpush.bf16.msra.mxu0 0
        %1179 = vmatpush.bf16.msra.mxu0 %v638
        %1180 = vmatpush.bf16.msra.mxu0 %v634
        %1181 = vmatpush.bf16.msra.mxu0 %v630
        %1182 = vmatmul.bf16.gmra.mxu0 %v1146
        %v1183 = vpop.f32.mrf.mxu0
        %v1184 = vadd.f32 0.0, %v1183
        %v1185 = vpop.f32.mrf.mxu0
        %1186 = vdwg.mxu0
        %1187 = vmatpush.bf16.msra.mxu0 0
        %1188 = vmatpush.bf16.msra.mxu0 0
        %1189 = vmatpush.bf16.msra.mxu0 0
        %1190 = vmatpush.bf16.msra.mxu0 0
        %1191 = vmatpush.bf16.msra.mxu0 0
        %1192 = vmatpush.bf16.msra.mxu0 %v639
        %1193 = vmatpush.bf16.msra.mxu0 %v635
        %1194 = vmatpush.bf16.msra.mxu0 %v631
        %1195 = vmatmul.bf16.gmra.mxu0 %v1146
        %v1196 = vpop.f32.mrf.mxu0
        %v1197 = vadd.f32 0.0, %v1196
        %v1198 = vpop.f32.mrf.mxu0
        %1199 = vdwg.mxu0
        %v1200 = vadd.f32 %v481, %v1158
        %v1201 = vadd.f32 %v510, %v1171
        %v1202 = vadd.f32 %v539, %v1184
        %v1203 = vadd.f32 %v568, %v1197
        %v1204 = vxor.u32 %v1200, 2147483648
        %v1205 = vmul.f32 %v1204, 1.442695
        %v1206 = vpow.pop %v1205
        %v1207 = vadd.f32 %v1206, 1.0
        %v1208 = vrcp.pop %v1207
        %v1209 = vmul.f32 %v1207, %v1208
        %v1210 = vsub.f32 1.0, %v1209
        %v1211 = vmul.f32 %v1208, %v1210
        %v1212 = vadd.f32 %v1208, %v1211
        %vm1213 = vweird.f32 %v1207
        %vm1214 = vweird.f32 %v1208
        %vm1215 = vmor %vm1213, %vm1214
        %v1216 = vsel %vm1215, %v1208, %v1212
        %v1217 = vand.u32 2147483647, %v1207
        %vm1218 = vcmp.eq.f32.partialorder %v1217, 8.507059e+37
        %v1219 = vand.u32 %v1207, 2147483648
        %v1220 = vor.u32 1.1754944e-38, %v1219
        %v1221 = vsel %vm1218, %v1220, %v1216
        %v1222 = vmul.f32 1.0, %v1221
        %v1223 = vxor.u32 %v1201, 2147483648
        %v1224 = vmul.f32 %v1223, 1.442695
        %v1225 = vpow.pop %v1224
        %v1226 = vadd.f32 %v1225, 1.0
        %v1227 = vrcp.pop %v1226
        %v1228 = vmul.f32 %v1226, %v1227
        %v1229 = vsub.f32 1.0, %v1228
        %v1230 = vmul.f32 %v1227, %v1229
        %v1231 = vadd.f32 %v1227, %v1230
        %vm1232 = vweird.f32 %v1226
        %vm1233 = vweird.f32 %v1227
        %vm1234 = vmor %vm1232, %vm1233
        %v1235 = vsel %vm1234, %v1227, %v1231
        %v1236 = vand.u32 2147483647, %v1226
        %vm1237 = vcmp.eq.f32.partialorder %v1236, 8.507059e+37
        %v1238 = vand.u32 %v1226, 2147483648
        %v1239 = vor.u32 1.1754944e-38, %v1238
        %v1240 = vsel %vm1237, %v1239, %v1235
        %v1241 = vmul.f32 1.0, %v1240
        %v1242 = vtanh.pop %v1202
        %v1243 = vxor.u32 %v1203, 2147483648
        %v1244 = vmul.f32 %v1243, 1.442695
        %v1245 = vpow.pop %v1244
        %v1246 = vadd.f32 %v1245, 1.0
        %v1247 = vrcp.pop %v1246
        %v1248 = vmul.f32 %v1246, %v1247
        %v1249 = vsub.f32 1.0, %v1248
        %v1250 = vmul.f32 %v1247, %v1249
        %v1251 = vadd.f32 %v1247, %v1250
        %vm1252 = vweird.f32 %v1246
        %vm1253 = vweird.f32 %v1247
        %vm1254 = vmor %vm1252, %vm1253
        %v1255 = vsel %vm1254, %v1247, %v1251
        %v1256 = vand.u32 2147483647, %v1246
        %vm1257 = vcmp.eq.f32.partialorder %v1256, 8.507059e+37
        %v1258 = vand.u32 %v1246, 2147483648
        %v1259 = vor.u32 1.1754944e-38, %v1258
        %v1260 = vsel %vm1257, %v1259, %v1255
        %v1261 = vmul.f32 1.0, %v1260
        %v1262 = vmul.f32 %v1241, %v1141
        %v1263 = vmul.f32 %v1222, %v1242
        %v1264 = vadd.f32 %v1262, %v1263
        %v1265 = vtanh.pop %v1264
        %v1266 = vmul.f32 %v1261, %v1265
        %v1267 = vpack.c.bf16 %v1266, %v1266
        %v1269 = vsel %vm652, %v1267, 0
        %1271 = vmatpush.bf16.msra.mxu0 0
        %1272 = vmatpush.bf16.msra.mxu0 0
        %1273 = vmatpush.bf16.msra.mxu0 0
        %1274 = vmatpush.bf16.msra.mxu0 0
        %1275 = vmatpush.bf16.msra.mxu0 0
        %1276 = vmatpush.bf16.msra.mxu0 %v636
        %1277 = vmatpush.bf16.msra.mxu0 %v632
        %1278 = vmatpush.bf16.msra.mxu0 %v628
        %1279 = vmatmul.bf16.gmra.mxu0 %v1269
        %v1280 = vpop.f32.mrf.mxu0
        %v1281 = vadd.f32 0.0, %v1280
        %v1282 = vpop.f32.mrf.mxu0
        %1283 = vdwg.mxu0
        %1284 = vmatpush.bf16.msra.mxu0 0
        %1285 = vmatpush.bf16.msra.mxu0 0
        %1286 = vmatpush.bf16.msra.mxu0 0
        %1287 = vmatpush.bf16.msra.mxu0 0
        %1288 = vmatpush.bf16.msra.mxu0 0
        %1289 = vmatpush.bf16.msra.mxu0 %v637
        %1290 = vmatpush.bf16.msra.mxu0 %v633
        %1291 = vmatpush.bf16.msra.mxu0 %v629
        %1292 = vmatmul.bf16.gmra.mxu0 %v1269
        %v1293 = vpop.f32.mrf.mxu0
        %v1294 = vadd.f32 0.0, %v1293
        %v1295 = vpop.f32.mrf.mxu0
        %1296 = vdwg.mxu0
        %1297 = vmatpush.bf16.msra.mxu0 0
        %1298 = vmatpush.bf16.msra.mxu0 0
        %1299 = vmatpush.bf16.msra.mxu0 0
        %1300 = vmatpush.bf16.msra.mxu0 0
        %1301 = vmatpush.bf16.msra.mxu0 0
        %1302 = vmatpush.bf16.msra.mxu0 %v638
        %1303 = vmatpush.bf16.msra.mxu0 %v634
        %1304 = vmatpush.bf16.msra.mxu0 %v630
        %1305 = vmatmul.bf16.gmra.mxu0 %v1269
        %v1306 = vpop.f32.mrf.mxu0
        %v1307 = vadd.f32 0.0, %v1306
        %v1308 = vpop.f32.mrf.mxu0
        %1309 = vdwg.mxu0
        %1310 = vmatpush.bf16.msra.mxu0 0
        %1311 = vmatpush.bf16.msra.mxu0 0
        %1312 = vmatpush.bf16.msra.mxu0 0
        %1313 = vmatpush.bf16.msra.mxu0 0
        %1314 = vmatpush.bf16.msra.mxu0 0
        %1315 = vmatpush.bf16.msra.mxu0 %v639
        %1316 = vmatpush.bf16.msra.mxu0 %v635
        %1317 = vmatpush.bf16.msra.mxu0 %v631
        %1318 = vmatmul.bf16.gmra.mxu0 %v1269
        %v1319 = vpop.f32.mrf.mxu0
        %v1320 = vadd.f32 0.0, %v1319
        %v1321 = vpop.f32.mrf.mxu0
        %1322 = vdwg.mxu0
        %v1323 = vadd.f32 %v483, %v1281
        %v1324 = vadd.f32 %v512, %v1294
        %v1325 = vadd.f32 %v541, %v1307
        %v1326 = vadd.f32 %v570, %v1320
        %v1327 = vxor.u32 %v1323, 2147483648
        %v1328 = vmul.f32 %v1327, 1.442695
        %v1329 = vpow.pop %v1328
        %v1330 = vadd.f32 %v1329, 1.0
        %v1331 = vrcp.pop %v1330
        %v1332 = vmul.f32 %v1330, %v1331
        %v1333 = vsub.f32 1.0, %v1332
        %v1334 = vmul.f32 %v1331, %v1333
        %v1335 = vadd.f32 %v1331, %v1334
        %vm1336 = vweird.f32 %v1330
        %vm1337 = vweird.f32 %v1331
        %vm1338 = vmor %vm1336, %vm1337
        %v1339 = vsel %vm1338, %v1331, %v1335
        %v1340 = vand.u32 2147483647, %v1330
        %vm1341 = vcmp.eq.f32.partialorder %v1340, 8.507059e+37
        %v1342 = vand.u32 %v1330, 2147483648
        %v1343 = vor.u32 1.1754944e-38, %v1342
        %v1344 = vsel %vm1341, %v1343, %v1339
        %v1345 = vmul.f32 1.0, %v1344
        %v1346 = vxor.u32 %v1324, 2147483648
        %v1347 = vmul.f32 %v1346, 1.442695
        %v1348 = vpow.pop %v1347
        %v1349 = vadd.f32 %v1348, 1.0
        %v1350 = vrcp.pop %v1349
        %v1351 = vmul.f32 %v1349, %v1350
        %v1352 = vsub.f32 1.0, %v1351
        %v1353 = vmul.f32 %v1350, %v1352
        %v1354 = vadd.f32 %v1350, %v1353
        %vm1355 = vweird.f32 %v1349
        %vm1356 = vweird.f32 %v1350
        %vm1357 = vmor %vm1355, %vm1356
        %v1358 = vsel %vm1357, %v1350, %v1354
        %v1359 = vand.u32 2147483647, %v1349
        %vm1360 = vcmp.eq.f32.partialorder %v1359, 8.507059e+37
        %v1361 = vand.u32 %v1349, 2147483648
        %v1362 = vor.u32 1.1754944e-38, %v1361
        %v1363 = vsel %vm1360, %v1362, %v1358
        %v1364 = vmul.f32 1.0, %v1363
        %v1365 = vtanh.pop %v1325
        %v1366 = vxor.u32 %v1326, 2147483648
        %v1367 = vmul.f32 %v1366, 1.442695
        %v1368 = vpow.pop %v1367
        %v1369 = vadd.f32 %v1368, 1.0
        %v1370 = vrcp.pop %v1369
        %v1371 = vmul.f32 %v1369, %v1370
        %v1372 = vsub.f32 1.0, %v1371
        %v1373 = vmul.f32 %v1370, %v1372
        %v1374 = vadd.f32 %v1370, %v1373
        %vm1375 = vweird.f32 %v1369
        %vm1376 = vweird.f32 %v1370
        %vm1377 = vmor %vm1375, %vm1376
        %v1378 = vsel %vm1377, %v1370, %v1374
        %v1379 = vand.u32 2147483647, %v1369
        %vm1380 = vcmp.eq.f32.partialorder %v1379, 8.507059e+37
        %v1381 = vand.u32 %v1369, 2147483648
        %v1382 = vor.u32 1.1754944e-38, %v1381
        %v1383 = vsel %vm1380, %v1382, %v1378
        %v1384 = vmul.f32 1.0, %v1383
        %v1385 = vmul.f32 %v1364, %v1264
        %v1386 = vmul.f32 %v1345, %v1365
        %v1387 = vadd.f32 %v1385, %v1386
        %v1388 = vtanh.pop %v1387
        %v1389 = vmul.f32 %v1384, %v1388
        %v1390 = vpack.c.bf16 %v1389, %v1389
        %v1392 = vsel %vm652, %v1390, 0
        %1394 = vmatpush.bf16.msra.mxu0 0
        %1395 = vmatpush.bf16.msra.mxu0 0
        %1396 = vmatpush.bf16.msra.mxu0 0
        %1397 = vmatpush.bf16.msra.mxu0 0
        %1398 = vmatpush.bf16.msra.mxu0 0
        %1399 = vmatpush.bf16.msra.mxu0 %v636
        %1400 = vmatpush.bf16.msra.mxu0 %v632
        %1401 = vmatpush.bf16.msra.mxu0 %v628
        %1402 = vmatmul.bf16.gmra.mxu0 %v1392
        %v1403 = vpop.f32.mrf.mxu0
        %v1404 = vadd.f32 0.0, %v1403
        %v1405 = vpop.f32.mrf.mxu0
        %1406 = vdwg.mxu0
        %1407 = vmatpush.bf16.msra.mxu0 0
        %1408 = vmatpush.bf16.msra.mxu0 0
        %1409 = vmatpush.bf16.msra.mxu0 0
        %1410 = vmatpush.bf16.msra.mxu0 0
        %1411 = vmatpush.bf16.msra.mxu0 0
        %1412 = vmatpush.bf16.msra.mxu0 %v637
        %1413 = vmatpush.bf16.msra.mxu0 %v633
        %1414 = vmatpush.bf16.msra.mxu0 %v629
        %1415 = vmatmul.bf16.gmra.mxu0 %v1392
        %v1416 = vpop.f32.mrf.mxu0
        %v1417 = vadd.f32 0.0, %v1416
        %v1418 = vpop.f32.mrf.mxu0
        %1419 = vdwg.mxu0
        %1420 = vmatpush.bf16.msra.mxu0 0
        %1421 = vmatpush.bf16.msra.mxu0 0
        %1422 = vmatpush.bf16.msra.mxu0 0
        %1423 = vmatpush.bf16.msra.mxu0 0
        %1424 = vmatpush.bf16.msra.mxu0 0
        %1425 = vmatpush.bf16.msra.mxu0 %v638
        %1426 = vmatpush.bf16.msra.mxu0 %v634
        %1427 = vmatpush.bf16.msra.mxu0 %v630
        %1428 = vmatmul.bf16.gmra.mxu0 %v1392
        %v1429 = vpop.f32.mrf.mxu0
        %v1430 = vadd.f32 0.0, %v1429
        %v1431 = vpop.f32.mrf.mxu0
        %1432 = vdwg.mxu0
        %1433 = vmatpush.bf16.msra.mxu0 0
        %1434 = vmatpush.bf16.msra.mxu0 0
        %1435 = vmatpush.bf16.msra.mxu0 0
        %1436 = vmatpush.bf16.msra.mxu0 0
        %1437 = vmatpush.bf16.msra.mxu0 0
        %1438 = vmatpush.bf16.msra.mxu0 %v639
        %1439 = vmatpush.bf16.msra.mxu0 %v635
        %1440 = vmatpush.bf16.msra.mxu0 %v631
        %1441 = vmatmul.bf16.gmra.mxu0 %v1392
        %v1442 = vpop.f32.mrf.mxu0
        %v1443 = vadd.f32 0.0, %v1442
        %v1444 = vpop.f32.mrf.mxu0
        %1445 = vdwg.mxu0
        %v1446 = vadd.f32 %v486, %v1404
        %v1447 = vadd.f32 %v515, %v1417
        %v1448 = vadd.f32 %v544, %v1430
        %v1449 = vadd.f32 %v573, %v1443
        %v1450 = vxor.u32 %v1446, 2147483648
        %v1451 = vmul.f32 %v1450, 1.442695
        %v1452 = vpow.pop %v1451
        %v1453 = vadd.f32 %v1452, 1.0
        %v1454 = vrcp.pop %v1453
        %v1455 = vmul.f32 %v1453, %v1454
        %v1456 = vsub.f32 1.0, %v1455
        %v1457 = vmul.f32 %v1454, %v1456
        %v1458 = vadd.f32 %v1454, %v1457
        %vm1459 = vweird.f32 %v1453
        %vm1460 = vweird.f32 %v1454
        %vm1461 = vmor %vm1459, %vm1460
        %v1462 = vsel %vm1461, %v1454, %v1458
        %v1463 = vand.u32 2147483647, %v1453
        %vm1464 = vcmp.eq.f32.partialorder %v1463, 8.507059e+37
        %v1465 = vand.u32 %v1453, 2147483648
        %v1466 = vor.u32 1.1754944e-38, %v1465
        %v1467 = vsel %vm1464, %v1466, %v1462
        %v1468 = vmul.f32 1.0, %v1467
        %v1469 = vxor.u32 %v1447, 2147483648
        %v1470 = vmul.f32 %v1469, 1.442695
        %v1471 = vpow.pop %v1470
        %v1472 = vadd.f32 %v1471, 1.0
        %v1473 = vrcp.pop %v1472
        %v1474 = vmul.f32 %v1472, %v1473
        %v1475 = vsub.f32 1.0, %v1474
        %v1476 = vmul.f32 %v1473, %v1475
        %v1477 = vadd.f32 %v1473, %v1476
        %vm1478 = vweird.f32 %v1472
        %vm1479 = vweird.f32 %v1473
        %vm1480 = vmor %vm1478, %vm1479
        %v1481 = vsel %vm1480, %v1473, %v1477
        %v1482 = vand.u32 2147483647, %v1472
        %vm1483 = vcmp.eq.f32.partialorder %v1482, 8.507059e+37
        %v1484 = vand.u32 %v1472, 2147483648
        %v1485 = vor.u32 1.1754944e-38, %v1484
        %v1486 = vsel %vm1483, %v1485, %v1481
        %v1487 = vmul.f32 1.0, %v1486
        %v1488 = vtanh.pop %v1448
        %v1489 = vxor.u32 %v1449, 2147483648
        %v1490 = vmul.f32 %v1489, 1.442695
        %v1491 = vpow.pop %v1490
        %v1492 = vadd.f32 %v1491, 1.0
        %v1493 = vrcp.pop %v1492
        %v1494 = vmul.f32 %v1492, %v1493
        %v1495 = vsub.f32 1.0, %v1494
        %v1496 = vmul.f32 %v1493, %v1495
        %v1497 = vadd.f32 %v1493, %v1496
        %vm1498 = vweird.f32 %v1492
        %vm1499 = vweird.f32 %v1493
        %vm1500 = vmor %vm1498, %vm1499
        %v1501 = vsel %vm1500, %v1493, %v1497
        %v1502 = vand.u32 2147483647, %v1492
        %vm1503 = vcmp.eq.f32.partialorder %v1502, 8.507059e+37
        %v1504 = vand.u32 %v1492, 2147483648
        %v1505 = vor.u32 1.1754944e-38, %v1504
        %v1506 = vsel %vm1503, %v1505, %v1501
        %v1507 = vmul.f32 1.0, %v1506
        %v1508 = vmul.f32 %v1487, %v1387
        %v1509 = vmul.f32 %v1468, %v1488
        %v1510 = vadd.f32 %v1508, %v1509
        %v1511 = vtanh.pop %v1510
        %v1512 = vmul.f32 %v1507, %v1511
        %v1513 = vpack.c.bf16 %v1512, %v1512
        %v1515 = vsel %vm652, %v1513, 0
        %1517 = vmatpush.bf16.msra.mxu0 0
        %1518 = vmatpush.bf16.msra.mxu0 0
        %1519 = vmatpush.bf16.msra.mxu0 0
        %1520 = vmatpush.bf16.msra.mxu0 0
        %1521 = vmatpush.bf16.msra.mxu0 0
        %1522 = vmatpush.bf16.msra.mxu0 %v636
        %1523 = vmatpush.bf16.msra.mxu0 %v632
        %1524 = vmatpush.bf16.msra.mxu0 %v628
        %1525 = vmatmul.bf16.gmra.mxu0 %v1515
        %v1526 = vpop.f32.mrf.mxu0
        %v1527 = vadd.f32 0.0, %v1526
        %v1528 = vpop.f32.mrf.mxu0
        %1529 = vdwg.mxu0
        %1530 = vmatpush.bf16.msra.mxu0 0
        %1531 = vmatpush.bf16.msra.mxu0 0
        %1532 = vmatpush.bf16.msra.mxu0 0
        %1533 = vmatpush.bf16.msra.mxu0 0
        %1534 = vmatpush.bf16.msra.mxu0 0
        %1535 = vmatpush.bf16.msra.mxu0 %v637
        %1536 = vmatpush.bf16.msra.mxu0 %v633
        %1537 = vmatpush.bf16.msra.mxu0 %v629
        %1538 = vmatmul.bf16.gmra.mxu0 %v1515
        %v1539 = vpop.f32.mrf.mxu0
        %v1540 = vadd.f32 0.0, %v1539
        %v1541 = vpop.f32.mrf.mxu0
        %1542 = vdwg.mxu0
        %1543 = vmatpush.bf16.msra.mxu0 0
        %1544 = vmatpush.bf16.msra.mxu0 0
        %1545 = vmatpush.bf16.msra.mxu0 0
        %1546 = vmatpush.bf16.msra.mxu0 0
        %1547 = vmatpush.bf16.msra.mxu0 0
        %1548 = vmatpush.bf16.msra.mxu0 %v638
        %1549 = vmatpush.bf16.msra.mxu0 %v634
        %1550 = vmatpush.bf16.msra.mxu0 %v630
        %1551 = vmatmul.bf16.gmra.mxu0 %v1515
        %v1552 = vpop.f32.mrf.mxu0
        %v1553 = vadd.f32 0.0, %v1552
        %v1554 = vpop.f32.mrf.mxu0
        %1555 = vdwg.mxu0
        %1556 = vmatpush.bf16.msra.mxu0 0
        %1557 = vmatpush.bf16.msra.mxu0 0
        %1558 = vmatpush.bf16.msra.mxu0 0
        %1559 = vmatpush.bf16.msra.mxu0 0
        %1560 = vmatpush.bf16.msra.mxu0 0
        %1561 = vmatpush.bf16.msra.mxu0 %v639
        %1562 = vmatpush.bf16.msra.mxu0 %v635
        %1563 = vmatpush.bf16.msra.mxu0 %v631
        %1564 = vmatmul.bf16.gmra.mxu0 %v1515
        %v1565 = vpop.f32.mrf.mxu0
        %v1566 = vadd.f32 0.0, %v1565
        %v1567 = vpop.f32.mrf.mxu0
        %1568 = vdwg.mxu0
        %v1569 = vadd.f32 %v488, %v1527
        %v1570 = vadd.f32 %v517, %v1540
        %v1571 = vadd.f32 %v546, %v1553
        %v1572 = vadd.f32 %v575, %v1566
        %v1573 = vxor.u32 %v1569, 2147483648
        %v1574 = vmul.f32 %v1573, 1.442695
        %v1575 = vpow.pop %v1574
        %v1576 = vadd.f32 %v1575, 1.0
        %v1577 = vrcp.pop %v1576
        %v1578 = vmul.f32 %v1576, %v1577
        %v1579 = vsub.f32 1.0, %v1578
        %v1580 = vmul.f32 %v1577, %v1579
        %v1581 = vadd.f32 %v1577, %v1580
        %vm1582 = vweird.f32 %v1576
        %vm1583 = vweird.f32 %v1577
        %vm1584 = vmor %vm1582, %vm1583
        %v1585 = vsel %vm1584, %v1577, %v1581
        %v1586 = vand.u32 2147483647, %v1576
        %vm1587 = vcmp.eq.f32.partialorder %v1586, 8.507059e+37
        %v1588 = vand.u32 %v1576, 2147483648
        %v1589 = vor.u32 1.1754944e-38, %v1588
        %v1590 = vsel %vm1587, %v1589, %v1585
        %v1591 = vmul.f32 1.0, %v1590
        %v1592 = vxor.u32 %v1570, 2147483648
        %v1593 = vmul.f32 %v1592, 1.442695
        %v1594 = vpow.pop %v1593
        %v1595 = vadd.f32 %v1594, 1.0
        %v1596 = vrcp.pop %v1595
        %v1597 = vmul.f32 %v1595, %v1596
        %v1598 = vsub.f32 1.0, %v1597
        %v1599 = vmul.f32 %v1596, %v1598
        %v1600 = vadd.f32 %v1596, %v1599
        %vm1601 = vweird.f32 %v1595
        %vm1602 = vweird.f32 %v1596
        %vm1603 = vmor %vm1601, %vm1602
        %v1604 = vsel %vm1603, %v1596, %v1600
        %v1605 = vand.u32 2147483647, %v1595
        %vm1606 = vcmp.eq.f32.partialorder %v1605, 8.507059e+37
        %v1607 = vand.u32 %v1595, 2147483648
        %v1608 = vor.u32 1.1754944e-38, %v1607
        %v1609 = vsel %vm1606, %v1608, %v1604
        %v1610 = vmul.f32 1.0, %v1609
        %v1611 = vtanh.pop %v1571
        %v1612 = vxor.u32 %v1572, 2147483648
        %v1613 = vmul.f32 %v1612, 1.442695
        %v1614 = vpow.pop %v1613
        %v1615 = vadd.f32 %v1614, 1.0
        %v1616 = vrcp.pop %v1615
        %v1617 = vmul.f32 %v1615, %v1616
        %v1618 = vsub.f32 1.0, %v1617
        %v1619 = vmul.f32 %v1616, %v1618
        %v1620 = vadd.f32 %v1616, %v1619
        %vm1621 = vweird.f32 %v1615
        %vm1622 = vweird.f32 %v1616
        %vm1623 = vmor %vm1621, %vm1622
        %v1624 = vsel %vm1623, %v1616, %v1620
        %v1625 = vand.u32 2147483647, %v1615
        %vm1626 = vcmp.eq.f32.partialorder %v1625, 8.507059e+37
        %v1627 = vand.u32 %v1615, 2147483648
        %v1628 = vor.u32 1.1754944e-38, %v1627
        %v1629 = vsel %vm1626, %v1628, %v1624
        %v1630 = vmul.f32 1.0, %v1629
        %v1631 = vmul.f32 %v1610, %v1510
        %v1632 = vmul.f32 %v1591, %v1611
        %v1633 = vadd.f32 %v1631, %v1632
        %v1634 = vtanh.pop %v1633
        %v1635 = vmul.f32 %v1630, %v1634
        %v1636 = vld [vmem:[%s331] sm:$0xff]
        %v1637 = vmul.f32 %v1635, %v1636
        %v1638 = vmul.f32 %v774, %v1637
        %1639 = vadd.xlane.f32.xlu0 %v1638
        %v1640 = vpop.xlane.xlu0 %1639
        %v1641 = vmul.f32 %v897, %v1637
        %1642 = vadd.xlane.f32.xlu0 %v1641
        %v1643 = vpop.xlane.xlu0 %1642
        %v1644 = vmul.f32 %v1020, %v1637
        %1645 = vadd.xlane.f32.xlu0 %v1644
        %v1646 = vpop.xlane.xlu0 %1645
        %v1647 = vmul.f32 %v1143, %v1637
        %1648 = vadd.xlane.f32.xlu0 %v1647
        %v1649 = vpop.xlane.xlu0 %1648
        %v1650 = vmul.f32 %v1266, %v1637
        %1651 = vadd.xlane.f32.xlu0 %v1650
        %v1652 = vpop.xlane.xlu0 %1651
        %v1653 = vmul.f32 %v1389, %v1637
        %1654 = vadd.xlane.f32.xlu0 %v1653
        %v1655 = vpop.xlane.xlu0 %1654
        %v1656 = vmul.f32 %v1512, %v1637
        %1657 = vadd.xlane.f32.xlu0 %v1656
        %v1658 = vpop.xlane.xlu0 %1657
        %v1659 = vmul.f32 %v1635, %v1637
        %1660 = vadd.xlane.f32.xlu0 %v1659
        %v1661 = vpop.xlane.xlu0 %1660
        %v1662 = vmax.f32 %v1640, %v1643
        %v1663 = vmax.f32 %v1662, %v1646
        %v1664 = vmax.f32 %v1663, %v1649
        %v1665 = vmax.f32 %v1664, %v1652
        %v1666 = vmax.f32 %v1665, %v1655
        %v1667 = vmax.f32 %v1666, %v1658
        %v1668 = vmax.f32 %v1667, %v1661
        %v1669 = vsub.f32 %v1640, %v1668
        %v1670 = vmul.f32 %v1669, 1.442695
        %v1671 = vpow.pop %v1670
        %v1672 = vsub.f32 %v1643, %v1668
        %v1673 = vmul.f32 %v1672, 1.442695
        %v1674 = vpow.pop %v1673
        %v1675 = vsub.f32 %v1646, %v1668
        %v1676 = vmul.f32 %v1675, 1.442695
        %v1677 = vpow.pop %v1676
        %v1678 = vsub.f32 %v1649, %v1668
        %v1679 = vmul.f32 %v1678, 1.442695
        %v1680 = vpow.pop %v1679
        %v1681 = vsub.f32 %v1652, %v1668
        %v1682 = vmul.f32 %v1681, 1.442695
        %v1683 = vpow.pop %v1682
        %v1684 = vsub.f32 %v1655, %v1668
        %v1685 = vmul.f32 %v1684, 1.442695
        %v1686 = vpow.pop %v1685
        %v1687 = vsub.f32 %v1658, %v1668
        %v1688 = vmul.f32 %v1687, 1.442695
        %v1689 = vpow.pop %v1688
        %v1690 = vsub.f32 %v1661, %v1668
        %v1691 = vmul.f32 %v1690, 1.442695
        %v1692 = vpow.pop %v1691
        %v1693 = vadd.f32 %v1671, %v1674
        %v1694 = vadd.f32 %v1693, %v1677
        %v1695 = vadd.f32 %v1694, %v1680
        %v1696 = vadd.f32 %v1695, %v1683
        %v1697 = vadd.f32 %v1696, %v1686
        %v1698 = vadd.f32 %v1697, %v1689
        %v1699 = vadd.f32 %v1698, %v1692
        %v1700 = vrcp.pop %v1699
        %v1701 = vmul.f32 %v1671, %v1700
        %v1702 = vmul.f32 %v1701, %v774
        %v1703 = vmul.f32 %v1674, %v1700
        %v1704 = vmul.f32 %v1703, %v897
        %v1705 = vadd.f32 %v1702, %v1704
        %v1706 = vmul.f32 %v1677, %v1700
        %v1707 = vmul.f32 %v1706, %v1020
        %v1708 = vadd.f32 %v1705, %v1707
        %v1709 = vmul.f32 %v1680, %v1700
        %v1710 = vmul.f32 %v1709, %v1143
        %v1711 = vadd.f32 %v1708, %v1710
        %v1712 = vmul.f32 %v1683, %v1700
        %v1713 = vmul.f32 %v1712, %v1266
        %v1714 = vadd.f32 %v1711, %v1713
        %v1715 = vmul.f32 %v1686, %v1700
        %v1716 = vmul.f32 %v1715, %v1389
        %v1717 = vadd.f32 %v1714, %v1716
        %v1718 = vmul.f32 %v1689, %v1700
        %v1719 = vmul.f32 %v1718, %v1512
        %v1720 = vadd.f32 %v1717, %v1719
        %v1721 = vmul.f32 %v1692, %v1700
        %v1722 = vmul.f32 %v1721, %v1635
        %v1723 = vadd.f32 %v1720, %v1722
        %v1724 = vpack.c.bf16 %v1723, %v1723
        %v1725 = vld [vmem:[%s5] sm:$0xf]
        %v1726 = vld [vmem:[%s5 + $0x4] sm:$0xf]
        %v1727 = vld [vmem:[%s5 + $0x8] sm:$0xf]
        %v1728 = vld [vmem:[%s5 + $0xc] sm:$0xf]
        %v1729 = vld [vmem:[%s5 + $0x10] sm:$0xf]
        %v1730 = vld [vmem:[%s5 + $0x14] sm:$0xf]
        %v1737 = vunpack.c.l.b16 %v1725
        %v1738 = vunpack.c.l.b16 %v1726
        %v1739 = vunpack.c.l.b16 %v1727
        %v1740 = vunpack.c.l.b16 %v1728
        %v1741 = vunpack.c.l.b16 %v1729
        %v1742 = vunpack.c.l.b16 %v1730
        %v1743 = vpack.c.b16 %v1738, %v1737
        %v1744 = vpack.c.b16 %v1740, %v1739
        %v1745 = vpack.c.b16 %v1742, %v1741
        %v1750 = vsel %vm652, %v1724, 0
        %1752 = vmatpush.bf16.msra.mxu0 0
        %1753 = vmatpush.bf16.msra.mxu0 0
        %1754 = vmatpush.bf16.msra.mxu0 0
        %1755 = vmatpush.bf16.msra.mxu0 0
        %1756 = vmatpush.bf16.msra.mxu0 0
        %1757 = vmatpush.bf16.msra.mxu0 %v1745
        %1758 = vmatpush.bf16.msra.mxu0 %v1744
        %1759 = vmatpush.bf16.msra.mxu0 %v1743
        %1760 = vmatmul.bf16.gmra.mxu0 %v1750
        %v1761 = vpop.f32.mrf.mxu0
        %v1762 = vadd.f32 0.0, %v1761
        %v1763 = vpop.f32.mrf.mxu0
        %1764 = vdwg.mxu0
        %1765 = vst [vmem:[%s376] sm:$0xff] %v1762
        %s1766 = scalar_lea.vmem %s376, 8 [#allocation8]
        %1767 = vst [vmem:[%s1766] sm:$0xff] %v1723
        %s1768 = scalar_lea.vmem %s376, 16 [#allocation8]
        %1769 = vst [vmem:[%s1768] sm:$0xff] %v1633
        %s1770 = sand.u32 %s200, 1
        %s1771 = scalar_lea.sflag [#allocation4], %s1770
        %s1772 = sand.u32 %s200, 1
        %s1773 = smul.addr %s1772, 24
        %s1774 = scalar_lea.vmem [#allocation8], %s1773
        // Predicated region
        $region61: #{tpu_custom_call.1} parent=47 // pred_check
          %p1775 = pneg %p210
        $region62: #{tpu_custom_call.1} parent=47 // pred_check_branch
          %1777 = sbr.rel (%p1775) target = $region64
        $region63: #{tpu_custom_call.1} parent=47 // pred_region
          %1779 = vsyncadd %s1771, 0
          %s1780 = smul.addr %s25, 8
          %s1781 = scalar_lea.hbm %s7, %s1780
          %s1782 = sshll.u32 %s1774, 4
          %s1783 = int_to_ptr.vmem [resolvable:$true] %s1782
          %s1784 = sshll.u32 %s1781, 4
          %s1785 = int_to_ptr.hbm [resolvable:$true] %s1784
          %1790 = dma.vmem_to_hbm [thread:$0]  %s1783, 384, %s1785, %s1771, 128, 256, 8
        $region64: #{tpu_custom_call.1} parent=47 // pred_fallthru
          _
      $region48: #{tpu_custom_call.1} parent=5 // pred_fallthru
        _
      %p1791 = scmp.le.s32.totalorder 2, %s20
      // Predicated region
      $region65: #{tpu_custom_call.1} parent=5 // pred_check
        %p1792 = pneg %p1791
      $region66: #{tpu_custom_call.1} parent=5 // pred_check_branch
        %1794 = sbr.rel (%p1792) target = $region68
      $region67: #{tpu_custom_call.1} parent=5 // pred_region
        %s1795 = ssub.s32 %s20, 2
        // Predicated region
        $region69: #{tpu_custom_call.1} parent=67 // pred_check
          %p1796 = pneg %p216
        $region70: #{tpu_custom_call.1} parent=67 // pred_check_branch
          %1798 = sbr.rel (%p1796) target = $region72
        $region71: #{tpu_custom_call.1} parent=67 // pred_region
          %s1799 = sand.u32 %s201, 1
          %s1800 = scalar_lea.sflag [#allocation4], %s1799
          %s1801 = sand.u32 %s201, 1
          %s1802 = smul.addr %s1801, 24
          %s1803 = scalar_lea.vmem [#allocation8], %s1802
          %1805 = dma.done %s1800, 384
        $region72: #{tpu_custom_call.1} parent=67 // pred_fallthru
          _
      $region68: #{tpu_custom_call.1} parent=5 // pred_fallthru
        _
    $region6: #{tpu_custom_call.1} parent=1 // loop_footer
      %s24 = sadd.s32 1, %s20
    $region7: #{tpu_custom_call.1} parent=1 // loop_footer_branch
      %19 = sbr.rel target = $region3
    $region8: #{tpu_custom_call.1} parent=1 // loop_exit
      _
    %1806 = vsyncpa [#allocation3], 1
    %s1807 = scalar_lea.sflag [#allocation3], 1
    %1808 = vsyncpa %s1807, 1
    %1809 = vsyncpa [#allocation6], 1
    %1810 = vsyncpa [#allocation4], 1
    %s1811 = scalar_lea.sflag [#allocation4], 1
    %1812 = vsyncpa %s1811, 1

</llo_original>
